<compile_context>
chip_gen: v5e
topology: v5e:2x2
jax: 0.10.0
libtpu: 0.0.40
codegen_flags: <defaults>
</compile_context>

<pallas_src>
import math

import jax
import jax.numpy as jnp
from jax import lax
from jax.experimental import pallas as pl
from jax.experimental.pallas import tpu as pltpu

# ---------------- small, forward-consistent config ----------------
B = 2            # batch
T = 8            # max_seq_len
D_MODEL = 32
NHEAD = 4
HEAD_DIM = D_MODEL // NHEAD
NUM_LAYERS = 2
D_FF = 64        # dim_feedforward
HEAD_HIDDEN = 64 # PredictionHeads hidden
LN_EPS = 1e-5
OUT_PAD = 32     # packed head-output width (>= 21 real outputs); was 128
NEG_INF = -1e30

_HEADS = (("main", 2), ("L", 1), ("R", 1), ("cdir", 5), ("btn", 12))
_HEAD_OFFS = []
_off = 0
for _n, _d in _HEADS:
    _HEAD_OFFS.append((_n, _off, _off + _d))
    _off += _d
N_HEAD_OUT = _off  # 21
assert OUT_PAD >= N_HEAD_OUT

# per-layer bias slab: one bias vector per sublane row, all lane-aligned at 0
(_ROW_LN1G, _ROW_LN1B, _ROW_BQKV, _ROW_BO,
 _ROW_LN2G, _ROW_LN2B, _ROW_B1, _ROW_B2) = range(8)
_BL_LANES = 128

# final-norm / head bias slab rows
_ROW_FG, _ROW_FB, _ROW_HB1, _ROW_HB2 = range(4)
_HB_LANES = len(_HEADS) * HEAD_HIDDEN   # 320


# ---------------- shared math helpers (usable in-kernel and in the reference) ----
def _layer_norm(x, g, b):
    mu = jnp.mean(x, axis=-1, keepdims=True)
    var = jnp.mean((x - mu) ** 2, axis=-1, keepdims=True)
    return (x - mu) * lax.rsqrt(var + LN_EPS) * g + b


def _gelu_exact(x):
    # torch.nn.GELU default = exact erf formulation
    return 0.5 * x * (1.0 + lax.erf(x * (1.0 / math.sqrt(2.0))))


# ---------------- fused Pallas kernel (one batch element per grid step) ----------
def fused_forward_kernel(x_ref, pos_ref, wqkv_ref, wo_ref, w1_ref, w2_ref,
                         bl_ref, hw1_ref, hw2_ref, hb_ref, out_ref):
    """Full FramePredictor forward for one batch element.

    x_ref: (1, T, D).  pos_ref: (T, D).  wqkv_ref: (L, D, 3D).  wo_ref: (L, D, D).
    w1_ref: (L, D, D_FF).  w2_ref: (L, D_FF, D).  bl_ref: (L, 8, 128).
    hw1_ref: (D, 5*H).  hw2_ref: (5*H, OUT_PAD) block-diagonal.  hb_ref: (8, 5*H).
    out_ref: (1, 8, OUT_PAD) — row 0 holds the packed raw head outputs.
    """
    x = x_ref[0] + pos_ref[...]                        # (T, D)
    n = x.shape[0]

    # Causal additive bias, built once; stacked along the sublane axis so ONE
    # softmax reduction chain serves all NHEAD heads.
    row = lax.broadcasted_iota(jnp.int32, (n, n), 0)
    col = lax.broadcasted_iota(jnp.int32, (n, n), 1)
    bias = jnp.where(col <= row, 0.0, NEG_INF).astype(jnp.float32)   # (T, T)
    bias_h = jnp.concatenate([bias] * NHEAD, axis=0)                 # (NHEAD*T, T)

    # NOTE: NUM_LAYERS=2 — static unroll is fine; switch to lax.fori_loop /
    # a layer grid axis if NUM_LAYERS or D_MODEL grows.
    for l in range(NUM_LAYERS):
        bl = bl_ref[l]                                 # (8, 128), lane-aligned rows
        ln1_g = bl[_ROW_LN1G:_ROW_LN1G + 1, :D_MODEL]
        ln1_b = bl[_ROW_LN1B:_ROW_LN1B + 1, :D_MODEL]
        bqkv = bl[_ROW_BQKV:_ROW_BQKV + 1, :3 * D_MODEL]
        bo = bl[_ROW_BO:_ROW_BO + 1, :D_MODEL]
        ln2_g = bl[_ROW_LN2G:_ROW_LN2G + 1, :D_MODEL]
        ln2_b = bl[_ROW_LN2B:_ROW_LN2B + 1, :D_MODEL]
        b1 = bl[_ROW_B1:_ROW_B1 + 1, :D_FF]
        b2 = bl[_ROW_B2:_ROW_B2 + 1, :D_MODEL]

        # ---- causal multi-head self-attention (pre-norm) ----
        # 1/sqrt(head_dim) is pre-folded into Wq/bq at pack time.
        xn = _layer_norm(x, ln1_g, ln1_b)
        qkv = jnp.dot(xn, wqkv_ref[l], preferred_element_type=jnp.float32) + bqkv

        # per-head scores, no K transpose (contract last dims), stacked on sublanes
        s_parts = []
        for h in range(NHEAD):                         # static, unrolled
            qh = qkv[:, h * HEAD_DIM:(h + 1) * HEAD_DIM]
            kh = qkv[:, D_MODEL + h * HEAD_DIM:D_MODEL + (h + 1) * HEAD_DIM]
            s_parts.append(lax.dot_general(
                qh, kh, (((1,), (1,)), ((), ())),
                preferred_element_type=jnp.float32))
        s = jnp.concatenate(s_parts, axis=0) + bias_h  # (NHEAD*T, T)

        # ONE softmax chain for all heads
        s = s - jnp.max(s, axis=-1, keepdims=True)
        p = jnp.exp(s)
        p = p * pl.reciprocal(jnp.sum(p, axis=-1, keepdims=True), approx=True)

        o_parts = []
        for h in range(NHEAD):
            vh = qkv[:, 2 * D_MODEL + h * HEAD_DIM:2 * D_MODEL + (h + 1) * HEAD_DIM]
            o_parts.append(jnp.dot(p[h * n:(h + 1) * n, :], vh,
                                   preferred_element_type=jnp.float32))
        o = jnp.concatenate(o_parts, axis=-1)          # (T, D)
        x = x + jnp.dot(o, wo_ref[l], preferred_element_type=jnp.float32) + bo

        # ---- feed-forward (pre-norm), exact-erf GELU ----
        xn2 = _layer_norm(x, ln2_g, ln2_b)
        h1 = _gelu_exact(jnp.dot(xn2, w1_ref[l],
                                 preferred_element_type=jnp.float32) + b1)
        x = x + jnp.dot(h1, w2_ref[l], preferred_element_type=jnp.float32) + b2

    # ---- last timestep: static sublane slice (no one-hot matmul) ----
    h_last = x[n - 1:n, :]                             # (1, D)

    # ---- final_norm + all five heads fused into two matmuls ----
    hb = hb_ref[...]                                   # (8, 5*H)
    hn = _layer_norm(h_last,
                     hb[_ROW_FG:_ROW_FG + 1, :D_MODEL],
                     hb[_ROW_FB:_ROW_FB + 1, :D_MODEL])
    z = jnp.dot(hn, hw1_ref[...], preferred_element_type=jnp.float32) \
        + hb[_ROW_HB1:_ROW_HB1 + 1, :]
    z = jnp.maximum(z, 0.0)                            # ReLU
    res = jnp.dot(z, hw2_ref[...], preferred_element_type=jnp.float32) \
        + hb[_ROW_HB2:_ROW_HB2 + 1, :OUT_PAD]          # (1, OUT_PAD)
    out_ref[0] = jnp.broadcast_to(res, (8, OUT_PAD))


# ---------------- pallas_call wrapper ----------------
def frame_predictor_forward(x_encoded, packed):
    """x_encoded: (B, T, d_model) — output of the (external) FrameEncoder."""
    Bn, Tn, Dn = x_encoded.shape
    slab3 = pl.pallas_call(
        fused_forward_kernel,
        out_shape=jax.ShapeDtypeStruct((Bn, 8, OUT_PAD), jnp.float32),
        grid=(Bn,),
        in_specs=[
            pl.BlockSpec((1, Tn, Dn), lambda b: (b, 0, 0)),                      # x
            pl.BlockSpec((Tn, Dn), lambda b: (0, 0)),                            # pos
            pl.BlockSpec((NUM_LAYERS, D_MODEL, 3 * D_MODEL), lambda b: (0, 0, 0)),  # wqkv
            pl.BlockSpec((NUM_LAYERS, D_MODEL, D_MODEL), lambda b: (0, 0, 0)),   # wo
            pl.BlockSpec((NUM_LAYERS, D_MODEL, D_FF), lambda b: (0, 0, 0)),      # w1
            pl.BlockSpec((NUM_LAYERS, D_FF, D_MODEL), lambda b: (0, 0, 0)),      # w2
            pl.BlockSpec((NUM_LAYERS, 8, _BL_LANES), lambda b: (0, 0, 0)),       # bl
            pl.BlockSpec((D_MODEL, _HB_LANES), lambda b: (0, 0)),                # hw1
            pl.BlockSpec((_HB_LANES, OUT_PAD), lambda b: (0, 0)),                # hw2
            pl.BlockSpec((8, _HB_LANES), lambda b: (0, 0)),                      # hb
        ],
        out_specs=pl.BlockSpec((1, 8, OUT_PAD), lambda b: (b, 0, 0)),
        compiler_params=pltpu.CompilerParams(dimension_semantics=("parallel",)),
    )(x_encoded, packed["pos"], packed["wqkv"], packed["wo"], packed["w1"],
      packed["w2"], packed["bl"], packed["hw1"], packed["hw2"], packed["hb"])

    slab = slab3[:, 0, :]                              # (B, OUT_PAD)
    off = {name: (s, e) for name, s, e in _HEAD_OFFS}
    cdl = slab[:, off["cdir"][0]:off["cdir"][1]]
    btl = slab[:, off["btn"][0]:off["btn"][1]]
    return dict(
        main_xy=jnp.tanh(slab[:, off["main"][0]:off["main"][1]]),
        L_val=jax.nn.sigmoid(slab[:, off["L"][0]:off["L"][1]]),
        R_val=jax.nn.sigmoid(slab[:, off["R"][0]:off["R"][1]]),
        c_dir_logits=cdl, c_dir_probs=jax.nn.sigmoid(cdl),
        btn_logits=btl, btn_probs=jax.nn.sigmoid(btl),
    )


# ---------------- parameter packing (done once, outside the kernel) ----------------
def pack_params(params):
    scale = 1.0 / math.sqrt(HEAD_DIM)
    wqkv_l, wo_l, w1_l, w2_l, bl_l = [], [], [], [], []
    for p in params["layers"]:
        wqkv_l.append(jnp.concatenate([p["wq"] * scale, p["wk"], p["wv"]], axis=1))
        wo_l.append(p["wo"])
        w1_l.append(p["w1"])
        w2_l.append(p["w2"])
        bqkv = jnp.concatenate([p["bq"] * scale, p["bk"], p["bv"]], axis=1)
        bl = jnp.zeros((8, _BL_LANES), jnp.float32)
        bl = bl.at[_ROW_LN1G, :D_MODEL].set(p["ln1_g"][0])
        bl = bl.at[_ROW_LN1B, :D_MODEL].set(p["ln1_b"][0])
        bl = bl.at[_ROW_BQKV, :3 * D_MODEL].set(bqkv[0])
        bl = bl.at[_ROW_BO, :D_MODEL].set(p["bo"][0])
        bl = bl.at[_ROW_LN2G, :D_MODEL].set(p["ln2_g"][0])
        bl = bl.at[_ROW_LN2B, :D_MODEL].set(p["ln2_b"][0])
        bl = bl.at[_ROW_B1, :D_FF].set(p["b1"][0])
        bl = bl.at[_ROW_B2, :D_MODEL].set(p["b2"][0])
        bl_l.append(bl)

    hd = params["heads"]
    hw1 = jnp.concatenate([hd[n]["w1"] for n, _ in _HEADS], axis=1)   # (D, 5*H)
    hb1 = jnp.concatenate([hd[n]["b1"] for n, _ in _HEADS], axis=1)   # (1, 5*H)
    hw2 = jnp.zeros((_HB_LANES, OUT_PAD), jnp.float32)                # block-diag
    hb2 = jnp.zeros((OUT_PAD,), jnp.float32)
    for i, (name, s, e) in enumerate(_HEAD_OFFS):
        hw2 = hw2.at[i * HEAD_HIDDEN:(i + 1) * HEAD_HIDDEN, s:e].set(hd[name]["w2"])
        hb2 = hb2.at[s:e].set(hd[name]["b2"][0])
    hb = jnp.zeros((8, _HB_LANES), jnp.float32)
    hb = hb.at[_ROW_FG, :D_MODEL].set(params["final_g"][0])
    hb = hb.at[_ROW_FB, :D_MODEL].set(params["final_b"][0])
    hb = hb.at[_ROW_HB1, :].set(hb1[0])
    hb = hb.at[_ROW_HB2, :OUT_PAD].set(hb2)

    return dict(
        pos=params["pos_emb"][0],                      # (T, D)
        wqkv=jnp.stack(wqkv_l),                        # (L, D, 3D)
        wo=jnp.stack(wo_l),                            # (L, D, D)
        w1=jnp.stack(w1_l),                            # (L, D, D_FF)
        w2=jnp.stack(w2_l),                            # (L, D_FF, D)
        bl=jnp.stack(bl_l),                            # (L, 8, 128)
        hw1=hw1, hw2=hw2, hb=hb,
    )


# ---------------- deterministic parameter construction ----------------
def init_params(key):
    keys = iter(jax.random.split(key, 256))

    def rnd(shape, scale=0.02):
        return jax.random.normal(next(keys), shape, jnp.float32) * scale

    params = {"pos_emb": rnd((1, T, D_MODEL)), "layers": []}
    for _ in range(NUM_LAYERS):
        layer = dict(
            ln1_g=jnp.ones((1, D_MODEL), jnp.float32),
            ln1_b=jnp.zeros((1, D_MODEL), jnp.float32),
            wq=rnd((D_MODEL, D_MODEL)), wk=rnd((D_MODEL, D_MODEL)),
            wv=rnd((D_MODEL, D_MODEL)),
            bq=rnd((1, D_MODEL)), bk=rnd((1, D_MODEL)), bv=rnd((1, D_MODEL)),
            wo=rnd((D_MODEL, D_MODEL)), bo=rnd((1, D_MODEL)),
            ln2_g=jnp.ones((1, D_MODEL), jnp.float32),
            ln2_b=jnp.zeros((1, D_MODEL), jnp.float32),
            w1=rnd((D_MODEL, D_FF)), b1=rnd((1, D_FF)),
            w2=rnd((D_FF, D_MODEL)), b2=rnd((1, D_MODEL)),
        )
        params["layers"].append(layer)
    params["final_g"] = jnp.ones((1, D_MODEL), jnp.float32)
    params["final_b"] = jnp.zeros((1, D_MODEL), jnp.float32)
    params["heads"] = {}
    for name, out_dim in _HEADS:
        params["heads"][name] = dict(
            w1=rnd((D_MODEL, HEAD_HIDDEN)), b1=rnd((1, HEAD_HIDDEN)),
            w2=rnd((HEAD_HIDDEN, out_dim)), b2=rnd((1, out_dim)),
        )
    return params


# ---------------- pure-JAX reference (for correctness check) ----------------
def _ref_block(x, p):
    Bn, Tn, _ = x.shape
    xn = _layer_norm(x, p["ln1_g"], p["ln1_b"])
    q = xn @ p["wq"] + p["bq"]
    k = xn @ p["wk"] + p["bk"]
    v = xn @ p["wv"] + p["bv"]

    def split(a):
        return a.reshape(Bn, Tn, NHEAD, HEAD_DIM).transpose(0, 2, 1, 3)

    qh, kh, vh = split(q), split(k), split(v)
    s = jnp.einsum("bhtd,bhsd->bhts", qh, kh) / math.sqrt(HEAD_DIM)
    causal = jnp.tril(jnp.ones((Tn, Tn), bool))
    s = jnp.where(causal, s, NEG_INF)
    p_attn = jax.nn.softmax(s, axis=-1)
    o = jnp.einsum("bhts,bhsd->bhtd", p_attn, vh)
    o = o.transpose(0, 2, 1, 3).reshape(Bn, Tn, D_MODEL)
    x = x + o @ p["wo"] + p["bo"]
    xn2 = _layer_norm(x, p["ln2_g"], p["ln2_b"])
    h1 = _gelu_exact(xn2 @ p["w1"] + p["b1"])
    return x + h1 @ p["w2"] + p["b2"]


def _ref_forward(x_encoded, params):
    x = x_encoded + params["pos_emb"][:, : x_encoded.shape[1]]
    for layer in params["layers"]:
        x = _ref_block(x, layer)
    h = _layer_norm(x[:, -1], params["final_g"], params["final_b"])

    def mlp(hp):
        z = jnp.maximum(h @ hp["w1"] + hp["b1"], 0.0)
        return z @ hp["w2"] + hp["b2"]

    hd = params["heads"]
    cdl = mlp(hd["cdir"])
    btl = mlp(hd["btn"])
    return dict(
        main_xy=jnp.tanh(mlp(hd["main"])),
        L_val=jax.nn.sigmoid(mlp(hd["L"])),
        R_val=jax.nn.sigmoid(mlp(hd["R"])),
        c_dir_logits=cdl, c_dir_probs=jax.nn.sigmoid(cdl),
        btn_logits=btl, btn_probs=jax.nn.sigmoid(btl),
    )


# ---------------- main ----------------
if __name__ == "__main__":
    key = jax.random.PRNGKey(0)
    k_x, k_p = jax.random.split(key)
    x_encoded = jax.random.normal(k_x, (B, T, D_MODEL), jnp.float32)
    params = init_params(k_p)
    packed = pack_params(params)

    out = frame_predictor_forward(x_encoded, packed)
    out = jax.block_until_ready(out)

    with jax.default_matmul_precision("highest"):
        ref = _ref_forward(x_encoded, params)
    for name in ("main_xy", "L_val", "R_val", "c_dir_logits", "c_dir_probs",
                 "btn_logits", "btn_probs"):
        assert out[name].shape == ref[name].shape, name
        assert jnp.allclose(out[name], ref[name], atol=1e-3, rtol=1e-2), name

    print("KERNEL_OK")
</pallas_src>

<mosaic_0001>
module attributes {stable_mosaic.version = 11 : i64} {
  func.func @fused_forward_kernel(%arg0: i32, %arg1: memref<1x8x32xf32, #tpu.memory_space<vmem>>, %arg2: memref<8x32xf32, #tpu.memory_space<vmem>>, %arg3: memref<2x32x96xf32, #tpu.memory_space<vmem>>, %arg4: memref<2x32x32xf32, #tpu.memory_space<vmem>>, %arg5: memref<2x32x64xf32, #tpu.memory_space<vmem>>, %arg6: memref<2x64x32xf32, #tpu.memory_space<vmem>>, %arg7: memref<2x8x128xf32, #tpu.memory_space<vmem>>, %arg8: memref<32x320xf32, #tpu.memory_space<vmem>>, %arg9: memref<320x32xf32, #tpu.memory_space<vmem>>, %arg10: memref<8x320xf32, #tpu.memory_space<vmem>>, %arg11: memref<1x8x32xf32, #tpu.memory_space<vmem>>) attributes {dimension_semantics = [#tpu.dimension_semantics<parallel>], iteration_bounds = array<i64: 2>, scalar_prefetch = 0 : i64, scratch_operands = 0 : i64, tpu.core_type = #tpu.core_type<tc>, window_params = [{transform_indices = @transform_0, window_bounds = array<i64: 1, 8, 32>}, {pipeline_mode = #tpu.pipeline_mode<synchronous>, transform_indices = @transform_1, window_bounds = array<i64: 8, 32>}, {pipeline_mode = #tpu.pipeline_mode<synchronous>, transform_indices = @transform_2, window_bounds = array<i64: 2, 32, 96>}, {pipeline_mode = #tpu.pipeline_mode<synchronous>, transform_indices = @transform_3, window_bounds = array<i64: 2, 32, 32>}, {pipeline_mode = #tpu.pipeline_mode<synchronous>, transform_indices = @transform_4, window_bounds = array<i64: 2, 32, 64>}, {pipeline_mode = #tpu.pipeline_mode<synchronous>, transform_indices = @transform_5, window_bounds = array<i64: 2, 64, 32>}, {pipeline_mode = #tpu.pipeline_mode<synchronous>, transform_indices = @transform_6, window_bounds = array<i64: 2, 8, 128>}, {pipeline_mode = #tpu.pipeline_mode<synchronous>, transform_indices = @transform_7, window_bounds = array<i64: 32, 320>}, {pipeline_mode = #tpu.pipeline_mode<synchronous>, transform_indices = @transform_8, window_bounds = array<i64: 320, 32>}, {pipeline_mode = #tpu.pipeline_mode<synchronous>, transform_indices = @transform_9, window_bounds = array<i64: 8, 320>}, {transform_indices = @transform_10, window_bounds = array<i64: 1, 8, 32>}]} {
    %c0 = arith.constant 0 : index
    %c0_0 = arith.constant 0 : index
    %c0_1 = arith.constant 0 : index
    %0 = vector.load %arg1[%c0, %c0_0, %c0_1] : memref<1x8x32xf32, #tpu.memory_space<vmem>>, vector<1x8x32xf32>
    %1 = vector.shape_cast %0 : vector<1x8x32xf32> to vector<8x32xf32>
    %c0_2 = arith.constant 0 : index
    %c0_3 = arith.constant 0 : index
    %2 = vector.load %arg2[%c0_2, %c0_3] : memref<8x32xf32, #tpu.memory_space<vmem>>, vector<8x32xf32>
    %3 = arith.addf %1, %2 : vector<8x32xf32>
    %4 = tpu.iota {dimensions = array<i32: 0>} : vector<8x8xi32>
    %5 = tpu.iota {dimensions = array<i32: 1>} : vector<8x8xi32>
    %6 = arith.cmpi sle, %5, %4 : vector<8x8xi32>
    %cst = arith.constant 0.000000e+00 : f32
    %cst_4 = arith.constant -1.000000e+30 : f32
    %7 = vector.broadcast %cst : f32 to vector<8x8xf32>
    %8 = vector.broadcast %cst_4 : f32 to vector<8x8xf32>
    %9 = arith.select %6, %7, %8 : vector<8x8xi1>, vector<8x8xf32>
    %10 = tpu.concatenate %9, %9, %9, %9 in 0 : vector<8x8xf32>, vector<8x8xf32>, vector<8x8xf32>, vector<8x8xf32> -> vector<32x8xf32>
    %c0_5 = arith.constant 0 : index
    %c0_6 = arith.constant 0 : index
    %c0_7 = arith.constant 0 : index
    %11 = vector.load %arg7[%c0_5, %c0_6, %c0_7] : memref<2x8x128xf32, #tpu.memory_space<vmem>>, vector<1x8x128xf32>
    %12 = vector.shape_cast %11 : vector<1x8x128xf32> to vector<8x128xf32>
    %13 = vector.extract_strided_slice %12 {offsets = [0, 0], sizes = [1, 32], strides = [1, 1]} : vector<8x128xf32> to vector<1x32xf32>
    %14 = vector.extract_strided_slice %12 {offsets = [1, 0], sizes = [1, 32], strides = [1, 1]} : vector<8x128xf32> to vector<1x32xf32>
    %15 = vector.extract_strided_slice %12 {offsets = [2, 0], sizes = [1, 96], strides = [1, 1]} : vector<8x128xf32> to vector<1x96xf32>
    %16 = vector.extract_strided_slice %12 {offsets = [3, 0], sizes = [1, 32], strides = [1, 1]} : vector<8x128xf32> to vector<1x32xf32>
    %17 = vector.extract_strided_slice %12 {offsets = [4, 0], sizes = [1, 32], strides = [1, 1]} : vector<8x128xf32> to vector<1x32xf32>
    %18 = vector.extract_strided_slice %12 {offsets = [5, 0], sizes = [1, 32], strides = [1, 1]} : vector<8x128xf32> to vector<1x32xf32>
    %19 = vector.extract_strided_slice %12 {offsets = [6, 0], sizes = [1, 64], strides = [1, 1]} : vector<8x128xf32> to vector<1x64xf32>
    %20 = vector.extract_strided_slice %12 {offsets = [7, 0], sizes = [1, 32], strides = [1, 1]} : vector<8x128xf32> to vector<1x32xf32>
    %cst_8 = arith.constant dense<0.000000e+00> : vector<8xf32>
    %21 = vector.multi_reduction <add>, %3, %cst_8 [1] : vector<8x32xf32> to vector<8xf32>
    %22 = vector.shape_cast %21 : vector<8xf32> to vector<8x1xf32>
    %cst_9 = arith.constant 3.200000e+01 : f32
    %23 = vector.broadcast %cst_9 : f32 to vector<8x1xf32>
    %24 = arith.divf %22, %23 : vector<8x1xf32>
    %25 = vector.broadcast %24 : vector<8x1xf32> to vector<8x32xf32>
    %26 = arith.subf %3, %25 : vector<8x32xf32>
    %27 = arith.mulf %26, %26 : vector<8x32xf32>
    %cst_10 = arith.constant dense<0.000000e+00> : vector<8xf32>
    %28 = vector.multi_reduction <add>, %27, %cst_10 [1] : vector<8x32xf32> to vector<8xf32>
    %29 = vector.shape_cast %28 : vector<8xf32> to vector<8x1xf32>
    %cst_11 = arith.constant 3.200000e+01 : f32
    %30 = vector.broadcast %cst_11 : f32 to vector<8x1xf32>
    %31 = arith.divf %29, %30 : vector<8x1xf32>
    %32 = vector.broadcast %24 : vector<8x1xf32> to vector<8x32xf32>
    %33 = arith.subf %3, %32 : vector<8x32xf32>
    %cst_12 = arith.constant 9.99999974E-6 : f32
    %34 = vector.broadcast %cst_12 : f32 to vector<8x1xf32>
    %35 = arith.addf %31, %34 : vector<8x1xf32>
    %36 = math.rsqrt %35 : vector<8x1xf32>
    %37 = vector.broadcast %36 : vector<8x1xf32> to vector<8x32xf32>
    %38 = arith.mulf %33, %37 : vector<8x32xf32>
    %39 = vector.broadcast %13 : vector<1x32xf32> to vector<8x32xf32>
    %40 = arith.mulf %38, %39 : vector<8x32xf32>
    %41 = vector.broadcast %14 : vector<1x32xf32> to vector<8x32xf32>
    %42 = arith.addf %40, %41 : vector<8x32xf32>
    %c0_13 = arith.constant 0 : index
    %c0_14 = arith.constant 0 : index
    %c0_15 = arith.constant 0 : index
    %43 = vector.load %arg3[%c0_13, %c0_14, %c0_15] : memref<2x32x96xf32, #tpu.memory_space<vmem>>, vector<1x32x96xf32>
    %44 = vector.shape_cast %43 : vector<1x32x96xf32> to vector<32x96xf32>
    %cst_16 = arith.constant dense<0.000000e+00> : vector<8x96xf32>
    %45 = tpu.matmul %42, %44, %cst_16 {dimension_numbers = #tpu.dot_dimension_numbers<[1], [0], [0], [1], [0, 0, 1, 1], [], []>} : vector<8x32xf32>, vector<32x96xf32>, vector<8x96xf32> -> vector<8x96xf32>
    %46 = vector.broadcast %15 : vector<1x96xf32> to vector<8x96xf32>
    %47 = arith.addf %45, %46 : vector<8x96xf32>
    %48 = vector.extract_strided_slice %47 {offsets = [0, 0], sizes = [8, 8], strides = [1, 1]} : vector<8x96xf32> to vector<8x8xf32>
    %49 = vector.extract_strided_slice %47 {offsets = [0, 32], sizes = [8, 8], strides = [1, 1]} : vector<8x96xf32> to vector<8x8xf32>
    %cst_17 = arith.constant dense<0.000000e+00> : vector<8x8xf32>
    %50 = tpu.matmul %48, %49, %cst_17 {dimension_numbers = #tpu.dot_dimension_numbers<[1], [1], [0], [0], [0, 0, 1, 0], [], []>} : vector<8x8xf32>, vector<8x8xf32>, vector<8x8xf32> -> vector<8x8xf32>
    %51 = vector.extract_strided_slice %47 {offsets = [0, 8], sizes = [8, 8], strides = [1, 1]} : vector<8x96xf32> to vector<8x8xf32>
    %52 = vector.extract_strided_slice %47 {offsets = [0, 40], sizes = [8, 8], strides = [1, 1]} : vector<8x96xf32> to vector<8x8xf32>
    %cst_18 = arith.constant dense<0.000000e+00> : vector<8x8xf32>
    %53 = tpu.matmul %51, %52, %cst_18 {dimension_numbers = #tpu.dot_dimension_numbers<[1], [1], [0], [0], [0, 0, 1, 0], [], []>} : vector<8x8xf32>, vector<8x8xf32>, vector<8x8xf32> -> vector<8x8xf32>
    %54 = vector.extract_strided_slice %47 {offsets = [0, 16], sizes = [8, 8], strides = [1, 1]} : vector<8x96xf32> to vector<8x8xf32>
    %55 = vector.extract_strided_slice %47 {offsets = [0, 48], sizes = [8, 8], strides = [1, 1]} : vector<8x96xf32> to vector<8x8xf32>
    %cst_19 = arith.constant dense<0.000000e+00> : vector<8x8xf32>
    %56 = tpu.matmul %54, %55, %cst_19 {dimension_numbers = #tpu.dot_dimension_numbers<[1], [1], [0], [0], [0, 0, 1, 0], [], []>} : vector<8x8xf32>, vector<8x8xf32>, vector<8x8xf32> -> vector<8x8xf32>
    %57 = vector.extract_strided_slice %47 {offsets = [0, 24], sizes = [8, 8], strides = [1, 1]} : vector<8x96xf32> to vector<8x8xf32>
    %58 = vector.extract_strided_slice %47 {offsets = [0, 56], sizes = [8, 8], strides = [1, 1]} : vector<8x96xf32> to vector<8x8xf32>
    %cst_20 = arith.constant dense<0.000000e+00> : vector<8x8xf32>
    %59 = tpu.matmul %57, %58, %cst_20 {dimension_numbers = #tpu.dot_dimension_numbers<[1], [1], [0], [0], [0, 0, 1, 0], [], []>} : vector<8x8xf32>, vector<8x8xf32>, vector<8x8xf32> -> vector<8x8xf32>
    %60 = tpu.concatenate %50, %53, %56, %59 in 0 : vector<8x8xf32>, vector<8x8xf32>, vector<8x8xf32>, vector<8x8xf32> -> vector<32x8xf32>
    %61 = arith.addf %60, %10 : vector<32x8xf32>
    %cst_21 = arith.constant dense<0xFF800000> : vector<32xf32>
    %62 = vector.multi_reduction <maximumf>, %61, %cst_21 [1] : vector<32x8xf32> to vector<32xf32>
    %63 = vector.shape_cast %62 : vector<32xf32> to vector<32x1xf32>
    %64 = vector.broadcast %63 : vector<32x1xf32> to vector<32x8xf32>
    %65 = arith.subf %61, %64 : vector<32x8xf32>
    %66 = math.exp %65 : vector<32x8xf32>
    %cst_22 = arith.constant dense<0.000000e+00> : vector<32xf32>
    %67 = vector.multi_reduction <add>, %66, %cst_22 [1] : vector<32x8xf32> to vector<32xf32>
    %68 = vector.shape_cast %67 : vector<32xf32> to vector<32x1xf32>
    %69 = tpu.reciprocal %68 {approx = true} : vector<32x1xf32> -> vector<32x1xf32>
    %70 = vector.broadcast %69 : vector<32x1xf32> to vector<32x8xf32>
    %71 = arith.mulf %66, %70 : vector<32x8xf32>
    %72 = vector.extract_strided_slice %47 {offsets = [0, 64], sizes = [8, 8], strides = [1, 1]} : vector<8x96xf32> to vector<8x8xf32>
    %73 = vector.extract_strided_slice %71 {offsets = [0, 0], sizes = [8, 8], strides = [1, 1]} : vector<32x8xf32> to vector<8x8xf32>
    %cst_23 = arith.constant dense<0.000000e+00> : vector<8x8xf32>
    %74 = tpu.matmul %73, %72, %cst_23 {dimension_numbers = #tpu.dot_dimension_numbers<[1], [0], [0], [1], [0, 0, 1, 1], [], []>} : vector<8x8xf32>, vector<8x8xf32>, vector<8x8xf32> -> vector<8x8xf32>
    %75 = vector.extract_strided_slice %47 {offsets = [0, 72], sizes = [8, 8], strides = [1, 1]} : vector<8x96xf32> to vector<8x8xf32>
    %76 = vector.extract_strided_slice %71 {offsets = [8, 0], sizes = [8, 8], strides = [1, 1]} : vector<32x8xf32> to vector<8x8xf32>
    %cst_24 = arith.constant dense<0.000000e+00> : vector<8x8xf32>
    %77 = tpu.matmul %76, %75, %cst_24 {dimension_numbers = #tpu.dot_dimension_numbers<[1], [0], [0], [1], [0, 0, 1, 1], [], []>} : vector<8x8xf32>, vector<8x8xf32>, vector<8x8xf32> -> vector<8x8xf32>
    %78 = vector.extract_strided_slice %47 {offsets = [0, 80], sizes = [8, 8], strides = [1, 1]} : vector<8x96xf32> to vector<8x8xf32>
    %79 = vector.extract_strided_slice %71 {offsets = [16, 0], sizes = [8, 8], strides = [1, 1]} : vector<32x8xf32> to vector<8x8xf32>
    %cst_25 = arith.constant dense<0.000000e+00> : vector<8x8xf32>
    %80 = tpu.matmul %79, %78, %cst_25 {dimension_numbers = #tpu.dot_dimension_numbers<[1], [0], [0], [1], [0, 0, 1, 1], [], []>} : vector<8x8xf32>, vector<8x8xf32>, vector<8x8xf32> -> vector<8x8xf32>
    %81 = vector.extract_strided_slice %47 {offsets = [0, 88], sizes = [8, 8], strides = [1, 1]} : vector<8x96xf32> to vector<8x8xf32>
    %82 = vector.extract_strided_slice %71 {offsets = [24, 0], sizes = [8, 8], strides = [1, 1]} : vector<32x8xf32> to vector<8x8xf32>
    %cst_26 = arith.constant dense<0.000000e+00> : vector<8x8xf32>
    %83 = tpu.matmul %82, %81, %cst_26 {dimension_numbers = #tpu.dot_dimension_numbers<[1], [0], [0], [1], [0, 0, 1, 1], [], []>} : vector<8x8xf32>, vector<8x8xf32>, vector<8x8xf32> -> vector<8x8xf32>
    %84 = tpu.concatenate %74, %77, %80, %83 in 1 : vector<8x8xf32>, vector<8x8xf32>, vector<8x8xf32>, vector<8x8xf32> -> vector<8x32xf32>
    %c0_27 = arith.constant 0 : index
    %c0_28 = arith.constant 0 : index
    %c0_29 = arith.constant 0 : index
    %85 = vector.load %arg4[%c0_27, %c0_28, %c0_29] : memref<2x32x32xf32, #tpu.memory_space<vmem>>, vector<1x32x32xf32>
    %86 = vector.shape_cast %85 : vector<1x32x32xf32> to vector<32x32xf32>
    %cst_30 = arith.constant dense<0.000000e+00> : vector<8x32xf32>
    %87 = tpu.matmul %84, %86, %cst_30 {dimension_numbers = #tpu.dot_dimension_numbers<[1], [0], [0], [1], [0, 0, 1, 1], [], []>} : vector<8x32xf32>, vector<32x32xf32>, vector<8x32xf32> -> vector<8x32xf32>
    %88 = arith.addf %3, %87 : vector<8x32xf32>
    %89 = vector.broadcast %16 : vector<1x32xf32> to vector<8x32xf32>
    %90 = arith.addf %88, %89 : vector<8x32xf32>
    %cst_31 = arith.constant dense<0.000000e+00> : vector<8xf32>
    %91 = vector.multi_reduction <add>, %90, %cst_31 [1] : vector<8x32xf32> to vector<8xf32>
    %92 = vector.shape_cast %91 : vector<8xf32> to vector<8x1xf32>
    %cst_32 = arith.constant 3.200000e+01 : f32
    %93 = vector.broadcast %cst_32 : f32 to vector<8x1xf32>
    %94 = arith.divf %92, %93 : vector<8x1xf32>
    %95 = vector.broadcast %94 : vector<8x1xf32> to vector<8x32xf32>
    %96 = arith.subf %90, %95 : vector<8x32xf32>
    %97 = arith.mulf %96, %96 : vector<8x32xf32>
    %cst_33 = arith.constant dense<0.000000e+00> : vector<8xf32>
    %98 = vector.multi_reduction <add>, %97, %cst_33 [1] : vector<8x32xf32> to vector<8xf32>
    %99 = vector.shape_cast %98 : vector<8xf32> to vector<8x1xf32>
    %cst_34 = arith.constant 3.200000e+01 : f32
    %100 = vector.broadcast %cst_34 : f32 to vector<8x1xf32>
    %101 = arith.divf %99, %100 : vector<8x1xf32>
    %102 = vector.broadcast %94 : vector<8x1xf32> to vector<8x32xf32>
    %103 = arith.subf %90, %102 : vector<8x32xf32>
    %cst_35 = arith.constant 9.99999974E-6 : f32
    %104 = vector.broadcast %cst_35 : f32 to vector<8x1xf32>
    %105 = arith.addf %101, %104 : vector<8x1xf32>
    %106 = math.rsqrt %105 : vector<8x1xf32>
    %107 = vector.broadcast %106 : vector<8x1xf32> to vector<8x32xf32>
    %108 = arith.mulf %103, %107 : vector<8x32xf32>
    %109 = vector.broadcast %17 : vector<1x32xf32> to vector<8x32xf32>
    %110 = arith.mulf %108, %109 : vector<8x32xf32>
    %111 = vector.broadcast %18 : vector<1x32xf32> to vector<8x32xf32>
    %112 = arith.addf %110, %111 : vector<8x32xf32>
    %c0_36 = arith.constant 0 : index
    %c0_37 = arith.constant 0 : index
    %c0_38 = arith.constant 0 : index
    %113 = vector.load %arg5[%c0_36, %c0_37, %c0_38] : memref<2x32x64xf32, #tpu.memory_space<vmem>>, vector<1x32x64xf32>
    %114 = vector.shape_cast %113 : vector<1x32x64xf32> to vector<32x64xf32>
    %cst_39 = arith.constant dense<0.000000e+00> : vector<8x64xf32>
    %115 = tpu.matmul %112, %114, %cst_39 {dimension_numbers = #tpu.dot_dimension_numbers<[1], [0], [0], [1], [0, 0, 1, 1], [], []>} : vector<8x32xf32>, vector<32x64xf32>, vector<8x64xf32> -> vector<8x64xf32>
    %116 = vector.broadcast %19 : vector<1x64xf32> to vector<8x64xf32>
    %117 = arith.addf %115, %116 : vector<8x64xf32>
    %cst_40 = arith.constant 5.000000e-01 : f32
    %118 = vector.broadcast %cst_40 : f32 to vector<8x64xf32>
    %119 = arith.mulf %118, %117 : vector<8x64xf32>
    %cst_41 = arith.constant 0.707106769 : f32
    %120 = vector.broadcast %cst_41 : f32 to vector<8x64xf32>
    %121 = arith.mulf %117, %120 : vector<8x64xf32>
    %122 = math.erf %121 : vector<8x64xf32>
    %cst_42 = arith.constant 1.000000e+00 : f32
    %123 = vector.broadcast %cst_42 : f32 to vector<8x64xf32>
    %124 = arith.addf %123, %122 : vector<8x64xf32>
    %125 = arith.mulf %119, %124 : vector<8x64xf32>
    %c0_43 = arith.constant 0 : index
    %c0_44 = arith.constant 0 : index
    %c0_45 = arith.constant 0 : index
    %126 = vector.load %arg6[%c0_43, %c0_44, %c0_45] : memref<2x64x32xf32, #tpu.memory_space<vmem>>, vector<1x64x32xf32>
    %127 = vector.shape_cast %126 : vector<1x64x32xf32> to vector<64x32xf32>
    %cst_46 = arith.constant dense<0.000000e+00> : vector<8x32xf32>
    %128 = tpu.matmul %125, %127, %cst_46 {dimension_numbers = #tpu.dot_dimension_numbers<[1], [0], [0], [1], [0, 0, 1, 1], [], []>} : vector<8x64xf32>, vector<64x32xf32>, vector<8x32xf32> -> vector<8x32xf32>
    %129 = arith.addf %90, %128 : vector<8x32xf32>
    %130 = vector.broadcast %20 : vector<1x32xf32> to vector<8x32xf32>
    %131 = arith.addf %129, %130 : vector<8x32xf32>
    %c1 = arith.constant 1 : index
    %c0_47 = arith.constant 0 : index
    %c0_48 = arith.constant 0 : index
    %132 = vector.load %arg7[%c1, %c0_47, %c0_48] : memref<2x8x128xf32, #tpu.memory_space<vmem>>, vector<1x8x128xf32>
    %133 = vector.shape_cast %132 : vector<1x8x128xf32> to vector<8x128xf32>
    %134 = vector.extract_strided_slice %133 {offsets = [0, 0], sizes = [1, 32], strides = [1, 1]} : vector<8x128xf32> to vector<1x32xf32>
    %135 = vector.extract_strided_slice %133 {offsets = [1, 0], sizes = [1, 32], strides = [1, 1]} : vector<8x128xf32> to vector<1x32xf32>
    %136 = vector.extract_strided_slice %133 {offsets = [2, 0], sizes = [1, 96], strides = [1, 1]} : vector<8x128xf32> to vector<1x96xf32>
    %137 = vector.extract_strided_slice %133 {offsets = [3, 0], sizes = [1, 32], strides = [1, 1]} : vector<8x128xf32> to vector<1x32xf32>
    %138 = vector.extract_strided_slice %133 {offsets = [4, 0], sizes = [1, 32], strides = [1, 1]} : vector<8x128xf32> to vector<1x32xf32>
    %139 = vector.extract_strided_slice %133 {offsets = [5, 0], sizes = [1, 32], strides = [1, 1]} : vector<8x128xf32> to vector<1x32xf32>
    %140 = vector.extract_strided_slice %133 {offsets = [6, 0], sizes = [1, 64], strides = [1, 1]} : vector<8x128xf32> to vector<1x64xf32>
    %141 = vector.extract_strided_slice %133 {offsets = [7, 0], sizes = [1, 32], strides = [1, 1]} : vector<8x128xf32> to vector<1x32xf32>
    %cst_49 = arith.constant dense<0.000000e+00> : vector<8xf32>
    %142 = vector.multi_reduction <add>, %131, %cst_49 [1] : vector<8x32xf32> to vector<8xf32>
    %143 = vector.shape_cast %142 : vector<8xf32> to vector<8x1xf32>
    %cst_50 = arith.constant 3.200000e+01 : f32
    %144 = vector.broadcast %cst_50 : f32 to vector<8x1xf32>
    %145 = arith.divf %143, %144 : vector<8x1xf32>
    %146 = vector.broadcast %145 : vector<8x1xf32> to vector<8x32xf32>
    %147 = arith.subf %131, %146 : vector<8x32xf32>
    %148 = arith.mulf %147, %147 : vector<8x32xf32>
    %cst_51 = arith.constant dense<0.000000e+00> : vector<8xf32>
    %149 = vector.multi_reduction <add>, %148, %cst_51 [1] : vector<8x32xf32> to vector<8xf32>
    %150 = vector.shape_cast %149 : vector<8xf32> to vector<8x1xf32>
    %cst_52 = arith.constant 3.200000e+01 : f32
    %151 = vector.broadcast %cst_52 : f32 to vector<8x1xf32>
    %152 = arith.divf %150, %151 : vector<8x1xf32>
    %153 = vector.broadcast %145 : vector<8x1xf32> to vector<8x32xf32>
    %154 = arith.subf %131, %153 : vector<8x32xf32>
    %cst_53 = arith.constant 9.99999974E-6 : f32
    %155 = vector.broadcast %cst_53 : f32 to vector<8x1xf32>
    %156 = arith.addf %152, %155 : vector<8x1xf32>
    %157 = math.rsqrt %156 : vector<8x1xf32>
    %158 = vector.broadcast %157 : vector<8x1xf32> to vector<8x32xf32>
    %159 = arith.mulf %154, %158 : vector<8x32xf32>
    %160 = vector.broadcast %134 : vector<1x32xf32> to vector<8x32xf32>
    %161 = arith.mulf %159, %160 : vector<8x32xf32>
    %162 = vector.broadcast %135 : vector<1x32xf32> to vector<8x32xf32>
    %163 = arith.addf %161, %162 : vector<8x32xf32>
    %c1_54 = arith.constant 1 : index
    %c0_55 = arith.constant 0 : index
    %c0_56 = arith.constant 0 : index
    %164 = vector.load %arg3[%c1_54, %c0_55, %c0_56] : memref<2x32x96xf32, #tpu.memory_space<vmem>>, vector<1x32x96xf32>
    %165 = vector.shape_cast %164 : vector<1x32x96xf32> to vector<32x96xf32>
    %cst_57 = arith.constant dense<0.000000e+00> : vector<8x96xf32>
    %166 = tpu.matmul %163, %165, %cst_57 {dimension_numbers = #tpu.dot_dimension_numbers<[1], [0], [0], [1], [0, 0, 1, 1], [], []>} : vector<8x32xf32>, vector<32x96xf32>, vector<8x96xf32> -> vector<8x96xf32>
    %167 = vector.broadcast %136 : vector<1x96xf32> to vector<8x96xf32>
    %168 = arith.addf %166, %167 : vector<8x96xf32>
    %169 = vector.extract_strided_slice %168 {offsets = [0, 0], sizes = [8, 8], strides = [1, 1]} : vector<8x96xf32> to vector<8x8xf32>
    %170 = vector.extract_strided_slice %168 {offsets = [0, 32], sizes = [8, 8], strides = [1, 1]} : vector<8x96xf32> to vector<8x8xf32>
    %cst_58 = arith.constant dense<0.000000e+00> : vector<8x8xf32>
    %171 = tpu.matmul %169, %170, %cst_58 {dimension_numbers = #tpu.dot_dimension_numbers<[1], [1], [0], [0], [0, 0, 1, 0], [], []>} : vector<8x8xf32>, vector<8x8xf32>, vector<8x8xf32> -> vector<8x8xf32>
    %172 = vector.extract_strided_slice %168 {offsets = [0, 8], sizes = [8, 8], strides = [1, 1]} : vector<8x96xf32> to vector<8x8xf32>
    %173 = vector.extract_strided_slice %168 {offsets = [0, 40], sizes = [8, 8], strides = [1, 1]} : vector<8x96xf32> to vector<8x8xf32>
    %cst_59 = arith.constant dense<0.000000e+00> : vector<8x8xf32>
    %174 = tpu.matmul %172, %173, %cst_59 {dimension_numbers = #tpu.dot_dimension_numbers<[1], [1], [0], [0], [0, 0, 1, 0], [], []>} : vector<8x8xf32>, vector<8x8xf32>, vector<8x8xf32> -> vector<8x8xf32>
    %175 = vector.extract_strided_slice %168 {offsets = [0, 16], sizes = [8, 8], strides = [1, 1]} : vector<8x96xf32> to vector<8x8xf32>
    %176 = vector.extract_strided_slice %168 {offsets = [0, 48], sizes = [8, 8], strides = [1, 1]} : vector<8x96xf32> to vector<8x8xf32>
    %cst_60 = arith.constant dense<0.000000e+00> : vector<8x8xf32>
    %177 = tpu.matmul %175, %176, %cst_60 {dimension_numbers = #tpu.dot_dimension_numbers<[1], [1], [0], [0], [0, 0, 1, 0], [], []>} : vector<8x8xf32>, vector<8x8xf32>, vector<8x8xf32> -> vector<8x8xf32>
    %178 = vector.extract_strided_slice %168 {offsets = [0, 24], sizes = [8, 8], strides = [1, 1]} : vector<8x96xf32> to vector<8x8xf32>
    %179 = vector.extract_strided_slice %168 {offsets = [0, 56], sizes = [8, 8], strides = [1, 1]} : vector<8x96xf32> to vector<8x8xf32>
    %cst_61 = arith.constant dense<0.000000e+00> : vector<8x8xf32>
    %180 = tpu.matmul %178, %179, %cst_61 {dimension_numbers = #tpu.dot_dimension_numbers<[1], [1], [0], [0], [0, 0, 1, 0], [], []>} : vector<8x8xf32>, vector<8x8xf32>, vector<8x8xf32> -> vector<8x8xf32>
    %181 = tpu.concatenate %171, %174, %177, %180 in 0 : vector<8x8xf32>, vector<8x8xf32>, vector<8x8xf32>, vector<8x8xf32> -> vector<32x8xf32>
    %182 = arith.addf %181, %10 : vector<32x8xf32>
    %cst_62 = arith.constant dense<0xFF800000> : vector<32xf32>
    %183 = vector.multi_reduction <maximumf>, %182, %cst_62 [1] : vector<32x8xf32> to vector<32xf32>
    %184 = vector.shape_cast %183 : vector<32xf32> to vector<32x1xf32>
    %185 = vector.broadcast %184 : vector<32x1xf32> to vector<32x8xf32>
    %186 = arith.subf %182, %185 : vector<32x8xf32>
    %187 = math.exp %186 : vector<32x8xf32>
    %cst_63 = arith.constant dense<0.000000e+00> : vector<32xf32>
    %188 = vector.multi_reduction <add>, %187, %cst_63 [1] : vector<32x8xf32> to vector<32xf32>
    %189 = vector.shape_cast %188 : vector<32xf32> to vector<32x1xf32>
    %190 = tpu.reciprocal %189 {approx = true} : vector<32x1xf32> -> vector<32x1xf32>
    %191 = vector.broadcast %190 : vector<32x1xf32> to vector<32x8xf32>
    %192 = arith.mulf %187, %191 : vector<32x8xf32>
    %193 = vector.extract_strided_slice %168 {offsets = [0, 64], sizes = [8, 8], strides = [1, 1]} : vector<8x96xf32> to vector<8x8xf32>
    %194 = vector.extract_strided_slice %192 {offsets = [0, 0], sizes = [8, 8], strides = [1, 1]} : vector<32x8xf32> to vector<8x8xf32>
    %cst_64 = arith.constant dense<0.000000e+00> : vector<8x8xf32>
    %195 = tpu.matmul %194, %193, %cst_64 {dimension_numbers = #tpu.dot_dimension_numbers<[1], [0], [0], [1], [0, 0, 1, 1], [], []>} : vector<8x8xf32>, vector<8x8xf32>, vector<8x8xf32> -> vector<8x8xf32>
    %196 = vector.extract_strided_slice %168 {offsets = [0, 72], sizes = [8, 8], strides = [1, 1]} : vector<8x96xf32> to vector<8x8xf32>
    %197 = vector.extract_strided_slice %192 {offsets = [8, 0], sizes = [8, 8], strides = [1, 1]} : vector<32x8xf32> to vector<8x8xf32>
    %cst_65 = arith.constant dense<0.000000e+00> : vector<8x8xf32>
    %198 = tpu.matmul %197, %196, %cst_65 {dimension_numbers = #tpu.dot_dimension_numbers<[1], [0], [0], [1], [0, 0, 1, 1], [], []>} : vector<8x8xf32>, vector<8x8xf32>, vector<8x8xf32> -> vector<8x8xf32>
    %199 = vector.extract_strided_slice %168 {offsets = [0, 80], sizes = [8, 8], strides = [1, 1]} : vector<8x96xf32> to vector<8x8xf32>
    %200 = vector.extract_strided_slice %192 {offsets = [16, 0], sizes = [8, 8], strides = [1, 1]} : vector<32x8xf32> to vector<8x8xf32>
    %cst_66 = arith.constant dense<0.000000e+00> : vector<8x8xf32>
    %201 = tpu.matmul %200, %199, %cst_66 {dimension_numbers = #tpu.dot_dimension_numbers<[1], [0], [0], [1], [0, 0, 1, 1], [], []>} : vector<8x8xf32>, vector<8x8xf32>, vector<8x8xf32> -> vector<8x8xf32>
    %202 = vector.extract_strided_slice %168 {offsets = [0, 88], sizes = [8, 8], strides = [1, 1]} : vector<8x96xf32> to vector<8x8xf32>
    %203 = vector.extract_strided_slice %192 {offsets = [24, 0], sizes = [8, 8], strides = [1, 1]} : vector<32x8xf32> to vector<8x8xf32>
    %cst_67 = arith.constant dense<0.000000e+00> : vector<8x8xf32>
    %204 = tpu.matmul %203, %202, %cst_67 {dimension_numbers = #tpu.dot_dimension_numbers<[1], [0], [0], [1], [0, 0, 1, 1], [], []>} : vector<8x8xf32>, vector<8x8xf32>, vector<8x8xf32> -> vector<8x8xf32>
    %205 = tpu.concatenate %195, %198, %201, %204 in 1 : vector<8x8xf32>, vector<8x8xf32>, vector<8x8xf32>, vector<8x8xf32> -> vector<8x32xf32>
    %c1_68 = arith.constant 1 : index
    %c0_69 = arith.constant 0 : index
    %c0_70 = arith.constant 0 : index
    %206 = vector.load %arg4[%c1_68, %c0_69, %c0_70] : memref<2x32x32xf32, #tpu.memory_space<vmem>>, vector<1x32x32xf32>
    %207 = vector.shape_cast %206 : vector<1x32x32xf32> to vector<32x32xf32>
    %cst_71 = arith.constant dense<0.000000e+00> : vector<8x32xf32>
    %208 = tpu.matmul %205, %207, %cst_71 {dimension_numbers = #tpu.dot_dimension_numbers<[1], [0], [0], [1], [0, 0, 1, 1], [], []>} : vector<8x32xf32>, vector<32x32xf32>, vector<8x32xf32> -> vector<8x32xf32>
    %209 = arith.addf %131, %208 : vector<8x32xf32>
    %210 = vector.broadcast %137 : vector<1x32xf32> to vector<8x32xf32>
    %211 = arith.addf %209, %210 : vector<8x32xf32>
    %cst_72 = arith.constant dense<0.000000e+00> : vector<8xf32>
    %212 = vector.multi_reduction <add>, %211, %cst_72 [1] : vector<8x32xf32> to vector<8xf32>
    %213 = vector.shape_cast %212 : vector<8xf32> to vector<8x1xf32>
    %cst_73 = arith.constant 3.200000e+01 : f32
    %214 = vector.broadcast %cst_73 : f32 to vector<8x1xf32>
    %215 = arith.divf %213, %214 : vector<8x1xf32>
    %216 = vector.broadcast %215 : vector<8x1xf32> to vector<8x32xf32>
    %217 = arith.subf %211, %216 : vector<8x32xf32>
    %218 = arith.mulf %217, %217 : vector<8x32xf32>
    %cst_74 = arith.constant dense<0.000000e+00> : vector<8xf32>
    %219 = vector.multi_reduction <add>, %218, %cst_74 [1] : vector<8x32xf32> to vector<8xf32>
    %220 = vector.shape_cast %219 : vector<8xf32> to vector<8x1xf32>
    %cst_75 = arith.constant 3.200000e+01 : f32
    %221 = vector.broadcast %cst_75 : f32 to vector<8x1xf32>
    %222 = arith.divf %220, %221 : vector<8x1xf32>
    %223 = vector.broadcast %215 : vector<8x1xf32> to vector<8x32xf32>
    %224 = arith.subf %211, %223 : vector<8x32xf32>
    %cst_76 = arith.constant 9.99999974E-6 : f32
    %225 = vector.broadcast %cst_76 : f32 to vector<8x1xf32>
    %226 = arith.addf %222, %225 : vector<8x1xf32>
    %227 = math.rsqrt %226 : vector<8x1xf32>
    %228 = vector.broadcast %227 : vector<8x1xf32> to vector<8x32xf32>
    %229 = arith.mulf %224, %228 : vector<8x32xf32>
    %230 = vector.broadcast %138 : vector<1x32xf32> to vector<8x32xf32>
    %231 = arith.mulf %229, %230 : vector<8x32xf32>
    %232 = vector.broadcast %139 : vector<1x32xf32> to vector<8x32xf32>
    %233 = arith.addf %231, %232 : vector<8x32xf32>
    %c1_77 = arith.constant 1 : index
    %c0_78 = arith.constant 0 : index
    %c0_79 = arith.constant 0 : index
    %234 = vector.load %arg5[%c1_77, %c0_78, %c0_79] : memref<2x32x64xf32, #tpu.memory_space<vmem>>, vector<1x32x64xf32>
    %235 = vector.shape_cast %234 : vector<1x32x64xf32> to vector<32x64xf32>
    %cst_80 = arith.constant dense<0.000000e+00> : vector<8x64xf32>
    %236 = tpu.matmul %233, %235, %cst_80 {dimension_numbers = #tpu.dot_dimension_numbers<[1], [0], [0], [1], [0, 0, 1, 1], [], []>} : vector<8x32xf32>, vector<32x64xf32>, vector<8x64xf32> -> vector<8x64xf32>
    %237 = vector.broadcast %140 : vector<1x64xf32> to vector<8x64xf32>
    %238 = arith.addf %236, %237 : vector<8x64xf32>
    %cst_81 = arith.constant 5.000000e-01 : f32
    %239 = vector.broadcast %cst_81 : f32 to vector<8x64xf32>
    %240 = arith.mulf %239, %238 : vector<8x64xf32>
    %cst_82 = arith.constant 0.707106769 : f32
    %241 = vector.broadcast %cst_82 : f32 to vector<8x64xf32>
    %242 = arith.mulf %238, %241 : vector<8x64xf32>
    %243 = math.erf %242 : vector<8x64xf32>
    %cst_83 = arith.constant 1.000000e+00 : f32
    %244 = vector.broadcast %cst_83 : f32 to vector<8x64xf32>
    %245 = arith.addf %244, %243 : vector<8x64xf32>
    %246 = arith.mulf %240, %245 : vector<8x64xf32>
    %c1_84 = arith.constant 1 : index
    %c0_85 = arith.constant 0 : index
    %c0_86 = arith.constant 0 : index
    %247 = vector.load %arg6[%c1_84, %c0_85, %c0_86] : memref<2x64x32xf32, #tpu.memory_space<vmem>>, vector<1x64x32xf32>
    %248 = vector.shape_cast %247 : vector<1x64x32xf32> to vector<64x32xf32>
    %cst_87 = arith.constant dense<0.000000e+00> : vector<8x32xf32>
    %249 = tpu.matmul %246, %248, %cst_87 {dimension_numbers = #tpu.dot_dimension_numbers<[1], [0], [0], [1], [0, 0, 1, 1], [], []>} : vector<8x64xf32>, vector<64x32xf32>, vector<8x32xf32> -> vector<8x32xf32>
    %250 = arith.addf %211, %249 : vector<8x32xf32>
    %251 = vector.broadcast %141 : vector<1x32xf32> to vector<8x32xf32>
    %252 = arith.addf %250, %251 : vector<8x32xf32>
    %253 = vector.extract_strided_slice %252 {offsets = [7, 0], sizes = [1, 32], strides = [1, 1]} : vector<8x32xf32> to vector<1x32xf32>
    %c0_88 = arith.constant 0 : index
    %c0_89 = arith.constant 0 : index
    %254 = vector.load %arg10[%c0_88, %c0_89] : memref<8x320xf32, #tpu.memory_space<vmem>>, vector<8x320xf32>
    %255 = vector.extract_strided_slice %254 {offsets = [0, 0], sizes = [1, 32], strides = [1, 1]} : vector<8x320xf32> to vector<1x32xf32>
    %256 = vector.extract_strided_slice %254 {offsets = [1, 0], sizes = [1, 32], strides = [1, 1]} : vector<8x320xf32> to vector<1x32xf32>
    %cst_90 = arith.constant dense<0.000000e+00> : vector<1xf32>
    %257 = vector.multi_reduction <add>, %253, %cst_90 [1] : vector<1x32xf32> to vector<1xf32>
    %258 = vector.shape_cast %257 : vector<1xf32> to vector<1x1xf32>
    %cst_91 = arith.constant 3.200000e+01 : f32
    %259 = vector.broadcast %cst_91 : f32 to vector<1x1xf32>
    %260 = arith.divf %258, %259 : vector<1x1xf32>
    %261 = vector.broadcast %260 : vector<1x1xf32> to vector<1x32xf32>
    %262 = arith.subf %253, %261 : vector<1x32xf32>
    %263 = arith.mulf %262, %262 : vector<1x32xf32>
    %cst_92 = arith.constant dense<0.000000e+00> : vector<1xf32>
    %264 = vector.multi_reduction <add>, %263, %cst_92 [1] : vector<1x32xf32> to vector<1xf32>
    %265 = vector.shape_cast %264 : vector<1xf32> to vector<1x1xf32>
    %cst_93 = arith.constant 3.200000e+01 : f32
    %266 = vector.broadcast %cst_93 : f32 to vector<1x1xf32>
    %267 = arith.divf %265, %266 : vector<1x1xf32>
    %268 = vector.broadcast %260 : vector<1x1xf32> to vector<1x32xf32>
    %269 = arith.subf %253, %268 : vector<1x32xf32>
    %cst_94 = arith.constant 9.99999974E-6 : f32
    %270 = vector.broadcast %cst_94 : f32 to vector<1x1xf32>
    %271 = arith.addf %267, %270 : vector<1x1xf32>
    %272 = math.rsqrt %271 : vector<1x1xf32>
    %273 = vector.broadcast %272 : vector<1x1xf32> to vector<1x32xf32>
    %274 = arith.mulf %269, %273 : vector<1x32xf32>
    %275 = arith.mulf %274, %255 : vector<1x32xf32>
    %276 = arith.addf %275, %256 : vector<1x32xf32>
    %c0_95 = arith.constant 0 : index
    %c0_96 = arith.constant 0 : index
    %277 = vector.load %arg8[%c0_95, %c0_96] : memref<32x320xf32, #tpu.memory_space<vmem>>, vector<32x320xf32>
    %cst_97 = arith.constant dense<0.000000e+00> : vector<1x320xf32>
    %278 = tpu.matmul %276, %277, %cst_97 {dimension_numbers = #tpu.dot_dimension_numbers<[1], [0], [0], [1], [0, 0, 1, 1], [], []>} : vector<1x32xf32>, vector<32x320xf32>, vector<1x320xf32> -> vector<1x320xf32>
    %279 = vector.extract_strided_slice %254 {offsets = [2, 0], sizes = [1, 320], strides = [1, 1]} : vector<8x320xf32> to vector<1x320xf32>
    %280 = arith.addf %278, %279 : vector<1x320xf32>
    %cst_98 = arith.constant 0.000000e+00 : f32
    %281 = vector.broadcast %cst_98 : f32 to vector<1x320xf32>
    %282 = arith.maximumf %280, %281 : vector<1x320xf32>
    %c0_99 = arith.constant 0 : index
    %c0_100 = arith.constant 0 : index
    %283 = vector.load %arg9[%c0_99, %c0_100] : memref<320x32xf32, #tpu.memory_space<vmem>>, vector<320x32xf32>
    %cst_101 = arith.constant dense<0.000000e+00> : vector<1x32xf32>
    %284 = tpu.matmul %282, %283, %cst_101 {dimension_numbers = #tpu.dot_dimension_numbers<[1], [0], [0], [1], [0, 0, 1, 1], [], []>} : vector<1x320xf32>, vector<320x32xf32>, vector<1x32xf32> -> vector<1x32xf32>
    %285 = vector.extract_strided_slice %254 {offsets = [3, 0], sizes = [1, 32], strides = [1, 1]} : vector<8x320xf32> to vector<1x32xf32>
    %286 = arith.addf %284, %285 : vector<1x32xf32>
    %287 = vector.shape_cast %286 : vector<1x32xf32> to vector<1x32xf32>
    %288 = vector.broadcast %287 : vector<1x32xf32> to vector<8x32xf32>
    %c0_102 = arith.constant 0 : index
    %c0_103 = arith.constant 0 : index
    %c0_104 = arith.constant 0 : index
    %289 = vector.load %arg11[%c0_102, %c0_103, %c0_104] : memref<1x8x32xf32, #tpu.memory_space<vmem>>, vector<1x8x32xf32>
    %290 = vector.shape_cast %289 : vector<1x8x32xf32> to vector<8x32xf32>
    %291 = vector.shape_cast %288 : vector<8x32xf32> to vector<1x8x32xf32>
    tpu.vector_store %arg11[%c0_102, %c0_103, %c0_104], %291 {strides = array<i32>} : memref<1x8x32xf32, #tpu.memory_space<vmem>>, vector<1x8x32xf32>,
    return
  }
  func.func @transform_0(%arg0: i32) -> (i32, i32, i32) {
    %c0_i32 = arith.constant 0 : i32
    %c0_i32_0 = arith.constant 0 : i32
    %c0_i32_1 = arith.constant 0 : i32
    return %arg0, %c0_i32, %c0_i32_0 : i32, i32, i32
  }
  func.func @transform_1(%arg0: i32) -> (i32, i32) {
    %c0_i32 = arith.constant 0 : i32
    %c0_i32_0 = arith.constant 0 : i32
    %c0_i32_1 = arith.constant 0 : i32
    return %c0_i32, %c0_i32_0 : i32, i32
  }
  func.func @transform_2(%arg0: i32) -> (i32, i32, i32) {
    %c0_i32 = arith.constant 0 : i32
    %c0_i32_0 = arith.constant 0 : i32
    %c0_i32_1 = arith.constant 0 : i32
    %c0_i32_2 = arith.constant 0 : i32
    return %c0_i32, %c0_i32_0, %c0_i32_1 : i32, i32, i32
  }
  func.func @transform_3(%arg0: i32) -> (i32, i32, i32) {
    %c0_i32 = arith.constant 0 : i32
    %c0_i32_0 = arith.constant 0 : i32
    %c0_i32_1 = arith.constant 0 : i32
    %c0_i32_2 = arith.constant 0 : i32
    return %c0_i32, %c0_i32_0, %c0_i32_1 : i32, i32, i32
  }
  func.func @transform_4(%arg0: i32) -> (i32, i32, i32) {
    %c0_i32 = arith.constant 0 : i32
    %c0_i32_0 = arith.constant 0 : i32
    %c0_i32_1 = arith.constant 0 : i32
    %c0_i32_2 = arith.constant 0 : i32
    return %c0_i32, %c0_i32_0, %c0_i32_1 : i32, i32, i32
  }
  func.func @transform_5(%arg0: i32) -> (i32, i32, i32) {
    %c0_i32 = arith.constant 0 : i32
    %c0_i32_0 = arith.constant 0 : i32
    %c0_i32_1 = arith.constant 0 : i32
    %c0_i32_2 = arith.constant 0 : i32
    return %c0_i32, %c0_i32_0, %c0_i32_1 : i32, i32, i32
  }
  func.func @transform_6(%arg0: i32) -> (i32, i32, i32) {
    %c0_i32 = arith.constant 0 : i32
    %c0_i32_0 = arith.constant 0 : i32
    %c0_i32_1 = arith.constant 0 : i32
    %c0_i32_2 = arith.constant 0 : i32
    return %c0_i32, %c0_i32_0, %c0_i32_1 : i32, i32, i32
  }
  func.func @transform_7(%arg0: i32) -> (i32, i32) {
    %c0_i32 = arith.constant 0 : i32
    %c0_i32_0 = arith.constant 0 : i32
    %c0_i32_1 = arith.constant 0 : i32
    return %c0_i32, %c0_i32_0 : i32, i32
  }
  func.func @transform_8(%arg0: i32) -> (i32, i32) {
    %c0_i32 = arith.constant 0 : i32
    %c0_i32_0 = arith.constant 0 : i32
    %c0_i32_1 = arith.constant 0 : i32
    return %c0_i32, %c0_i32_0 : i32, i32
  }
  func.func @transform_9(%arg0: i32) -> (i32, i32) {
    %c0_i32 = arith.constant 0 : i32
    %c0_i32_0 = arith.constant 0 : i32
    %c0_i32_1 = arith.constant 0 : i32
    return %c0_i32, %c0_i32_0 : i32, i32
  }
  func.func @transform_10(%arg0: i32) -> (i32, i32, i32) {
    %c0_i32 = arith.constant 0 : i32
    %c0_i32_0 = arith.constant 0 : i32
    %c0_i32_1 = arith.constant 0 : i32
    return %arg0, %c0_i32, %c0_i32_0 : i32, i32, i32
  }
}

</mosaic_0001>

<llo_original>
// kernel: tpu_custom_call.1
$region0: #{tpu_custom_call.1}
  #allocation0 [shape = 'u32[]', space=smem, size = 0x4, offset = 0x4, fixed_abs, tag = 'smem constant byte address 0x4 - core index']
  #allocation1 [shape = 'u32[72,128]{1,0:T(1,128)}', space=vmem, size = 0x9000, scoped, tag = 'internal scratch']
  %s0 = inlined_call_operand.vmem [shape: f32[2,8,32], index: 0, kind: input, shape index: {}]
  %s1 = inlined_call_operand.vmem [shape: f32[8,32], index: 1, kind: input, shape index: {}]
  %s2 = inlined_call_operand.vmem [shape: f32[2,32,96], index: 2, kind: input, shape index: {}]
  %s3 = inlined_call_operand.vmem [shape: f32[2,32,32], index: 3, kind: input, shape index: {}]
  %s4 = inlined_call_operand.vmem [shape: f32[2,32,64], index: 4, kind: input, shape index: {}]
  %s5 = inlined_call_operand.vmem [shape: f32[2,64,32], index: 5, kind: input, shape index: {}]
  %s6 = inlined_call_operand.vmem [shape: f32[2,8,128], index: 6, kind: input, shape index: {}]
  %s7 = inlined_call_operand.vmem [shape: f32[32,320], index: 7, kind: input, shape index: {}]
  %s8 = inlined_call_operand.vmem [shape: f32[320,32], index: 8, kind: input, shape index: {}]
  %s9 = inlined_call_operand.vmem [shape: f32[8,320], index: 9, kind: input, shape index: {}]
  %s10 = inlined_call_operand.hbm [shape: f32[2,8,32], index: 10, kind: output, shape index: {}]
  %s11 = sld [smem:[#allocation0]]
  $region73: #{tpu_custom_call.1} parent=0
    _
  %s13 = ssub.s32 1, %s11
  %s14 = scalar_select 0, %s13, %s11
  $region1: #{tpu_custom_call.1} parent=0
    #allocation2 [shape = 'u8[8192]{0}', space=vmem, size = 0x2000, scoped, tag = 'output window, operand 0']
    #allocation3 [shape = 's32[2]{0}', space=sflag, size = 0x8, scoped, tag = 'scoped memory for tpu_custom_call.1']
    %15 = vsyncpa [#allocation3], 0
    %s16 = scalar_lea.sflag [#allocation3], 1
    %17 = vsyncpa %s16, 0
    loop: start=0, step=1, limit=4
    $region2: #{tpu_custom_call.1} parent=1 // loop_pre_header
      _
    $region3: #{tpu_custom_call.1} parent=1 // loop_header
      %s19 = sphi 0, %s23
      %p20 = scmp.ge.s32.totalorder %s19, 4
      %s29 = sphi 0, %s31
      %s32 = sphi 0, %s29
      %s33 = sphi 0, %s32
      %s49 = sphi 0, %s33
      %s53 = sphi 0, %s53
      %s55 = sphi 0, %s53
      %s56 = sphi 0, %s55
      %s70 = sphi 0, %s56
      %s74 = sphi 0, %s74
      %s76 = sphi 0, %s74
      %s77 = sphi 0, %s76
      %s91 = sphi 0, %s77
      %s95 = sphi 0, %s95
      %s97 = sphi 0, %s95
      %s98 = sphi 0, %s97
      %s112 = sphi 0, %s98
      %s116 = sphi 0, %s116
      %s118 = sphi 0, %s116
      %s119 = sphi 0, %s118
      %s133 = sphi 0, %s119
      %s137 = sphi 0, %s137
      %s139 = sphi 0, %s137
      %s140 = sphi 0, %s139
      %s154 = sphi 0, %s140
      %s158 = sphi 0, %s158
      %s160 = sphi 0, %s158
      %s161 = sphi 0, %s160
      %s175 = sphi 0, %s161
      %s179 = sphi 0, %s179
      %s181 = sphi 0, %s179
      %s182 = sphi 0, %s181
      %s196 = sphi 0, %s182
      %s200 = sphi 0, %s200
      %s202 = sphi 0, %s200
      %s203 = sphi 0, %s202
      %s217 = sphi 0, %s203
      %s221 = sphi 0, %s221
      %s223 = sphi 0, %s221
      %s224 = sphi 0, %s223
      %s238 = sphi 0, %s224
      %s244 = sphi 0, %s246
      %s247 = sphi 0, %s244
      %s248 = sphi 0, %s247
      %s264 = sphi 0, %s248
    $region4: #{tpu_custom_call.1} parent=1 // loop_header_branch
      %22 = sbr.rel (%p20) target = $region8
    $region5: #{tpu_custom_call.1} parent=1 // loop_body
      %s24 = ssub.s32 %s19, 1
      %s25 = ssub.s32 %s19, 2
      %s26 = sadd.s32 %s19, 1
      %s27 = ssub.s32 %s19, %s26
      %p28 = scmp.eq.s32.totalorder %s27, 0
      %s30 = sadd.s32 %s29, 1
      %s31 = scalar_select %p28, %s29, %s30
      %p34 = pneg %p28
      %p35 = scmp.eq.s32.totalorder %s19, 1
      %p36 = por %p34, %p35
      %p37 = scmp.ne.s32.totalorder %s29, %s32
      %p38 = scmp.eq.s32.totalorder %s19, 0
      %p39 = por %p37, %p38
      %p40 = scmp.ne.s32.totalorder %s29, %s32
      %p41 = scmp.eq.s32.totalorder %s24, 1
      %p42 = por %p40, %p41
      %p43 = scmp.ne.s32.totalorder %s32, %s33
      %p44 = scmp.eq.s32.totalorder %s24, 0
      %p45 = por %p43, %p44
      %p46 = scmp.ne.s32.totalorder %s32, %s33
      %p47 = scmp.eq.s32.totalorder %s25, 1
      %p48 = por %p46, %p47
      %p50 = scmp.ne.s32.totalorder %s33, %s49
      %p51 = scmp.eq.s32.totalorder %s25, 0
      %p52 = por %p50, %p51
      %s54 = sadd.s32 %s53, 1
      %p57 = scmp.eq.s32.totalorder %s19, 1
      %p58 = scmp.ne.s32.totalorder %s53, %s55
      %p59 = scmp.eq.s32.totalorder %s19, 0
      %p60 = por %p58, %p59
      %p61 = scmp.ne.s32.totalorder %s53, %s55
      %p62 = scmp.eq.s32.totalorder %s24, 1
      %p63 = por %p61, %p62
      %p64 = scmp.ne.s32.totalorder %s55, %s56
      %p65 = scmp.eq.s32.totalorder %s24, 0
      %p66 = por %p64, %p65
      %p67 = scmp.ne.s32.totalorder %s55, %s56
      %p68 = scmp.eq.s32.totalorder %s25, 1
      %p69 = por %p67, %p68
      %p71 = scmp.ne.s32.totalorder %s56, %s70
      %p72 = scmp.eq.s32.totalorder %s25, 0
      %p73 = por %p71, %p72
      %s75 = sadd.s32 %s74, 1
      %p78 = scmp.eq.s32.totalorder %s19, 1
      %p79 = scmp.ne.s32.totalorder %s74, %s76
      %p80 = scmp.eq.s32.totalorder %s19, 0
      %p81 = por %p79, %p80
      %p82 = scmp.ne.s32.totalorder %s74, %s76
      %p83 = scmp.eq.s32.totalorder %s24, 1
      %p84 = por %p82, %p83
      %p85 = scmp.ne.s32.totalorder %s76, %s77
      %p86 = scmp.eq.s32.totalorder %s24, 0
      %p87 = por %p85, %p86
      %p88 = scmp.ne.s32.totalorder %s76, %s77
      %p89 = scmp.eq.s32.totalorder %s25, 1
      %p90 = por %p88, %p89
      %p92 = scmp.ne.s32.totalorder %s77, %s91
      %p93 = scmp.eq.s32.totalorder %s25, 0
      %p94 = por %p92, %p93
      %s96 = sadd.s32 %s95, 1
      %p99 = scmp.eq.s32.totalorder %s19, 1
      %p100 = scmp.ne.s32.totalorder %s95, %s97
      %p101 = scmp.eq.s32.totalorder %s19, 0
      %p102 = por %p100, %p101
      %p103 = scmp.ne.s32.totalorder %s95, %s97
      %p104 = scmp.eq.s32.totalorder %s24, 1
      %p105 = por %p103, %p104
      %p106 = scmp.ne.s32.totalorder %s97, %s98
      %p107 = scmp.eq.s32.totalorder %s24, 0
      %p108 = por %p106, %p107
      %p109 = scmp.ne.s32.totalorder %s97, %s98
      %p110 = scmp.eq.s32.totalorder %s25, 1
      %p111 = por %p109, %p110
      %p113 = scmp.ne.s32.totalorder %s98, %s112
      %p114 = scmp.eq.s32.totalorder %s25, 0
      %p115 = por %p113, %p114
      %s117 = sadd.s32 %s116, 1
      %p120 = scmp.eq.s32.totalorder %s19, 1
      %p121 = scmp.ne.s32.totalorder %s116, %s118
      %p122 = scmp.eq.s32.totalorder %s19, 0
      %p123 = por %p121, %p122
      %p124 = scmp.ne.s32.totalorder %s116, %s118
      %p125 = scmp.eq.s32.totalorder %s24, 1
      %p126 = por %p124, %p125
      %p127 = scmp.ne.s32.totalorder %s118, %s119
      %p128 = scmp.eq.s32.totalorder %s24, 0
      %p129 = por %p127, %p128
      %p130 = scmp.ne.s32.totalorder %s118, %s119
      %p131 = scmp.eq.s32.totalorder %s25, 1
      %p132 = por %p130, %p131
      %p134 = scmp.ne.s32.totalorder %s119, %s133
      %p135 = scmp.eq.s32.totalorder %s25, 0
      %p136 = por %p134, %p135
      %s138 = sadd.s32 %s137, 1
      %p141 = scmp.eq.s32.totalorder %s19, 1
      %p142 = scmp.ne.s32.totalorder %s137, %s139
      %p143 = scmp.eq.s32.totalorder %s19, 0
      %p144 = por %p142, %p143
      %p145 = scmp.ne.s32.totalorder %s137, %s139
      %p146 = scmp.eq.s32.totalorder %s24, 1
      %p147 = por %p145, %p146
      %p148 = scmp.ne.s32.totalorder %s139, %s140
      %p149 = scmp.eq.s32.totalorder %s24, 0
      %p150 = por %p148, %p149
      %p151 = scmp.ne.s32.totalorder %s139, %s140
      %p152 = scmp.eq.s32.totalorder %s25, 1
      %p153 = por %p151, %p152
      %p155 = scmp.ne.s32.totalorder %s140, %s154
      %p156 = scmp.eq.s32.totalorder %s25, 0
      %p157 = por %p155, %p156
      %s159 = sadd.s32 %s158, 1
      %p162 = scmp.eq.s32.totalorder %s19, 1
      %p163 = scmp.ne.s32.totalorder %s158, %s160
      %p164 = scmp.eq.s32.totalorder %s19, 0
      %p165 = por %p163, %p164
      %p166 = scmp.ne.s32.totalorder %s158, %s160
      %p167 = scmp.eq.s32.totalorder %s24, 1
      %p168 = por %p166, %p167
      %p169 = scmp.ne.s32.totalorder %s160, %s161
      %p170 = scmp.eq.s32.totalorder %s24, 0
      %p171 = por %p169, %p170
      %p172 = scmp.ne.s32.totalorder %s160, %s161
      %p173 = scmp.eq.s32.totalorder %s25, 1
      %p174 = por %p172, %p173
      %p176 = scmp.ne.s32.totalorder %s161, %s175
      %p177 = scmp.eq.s32.totalorder %s25, 0
      %p178 = por %p176, %p177
      %s180 = sadd.s32 %s179, 1
      %p183 = scmp.eq.s32.totalorder %s19, 1
      %p184 = scmp.ne.s32.totalorder %s179, %s181
      %p185 = scmp.eq.s32.totalorder %s19, 0
      %p186 = por %p184, %p185
      %p187 = scmp.ne.s32.totalorder %s179, %s181
      %p188 = scmp.eq.s32.totalorder %s24, 1
      %p189 = por %p187, %p188
      %p190 = scmp.ne.s32.totalorder %s181, %s182
      %p191 = scmp.eq.s32.totalorder %s24, 0
      %p192 = por %p190, %p191
      %p193 = scmp.ne.s32.totalorder %s181, %s182
      %p194 = scmp.eq.s32.totalorder %s25, 1
      %p195 = por %p193, %p194
      %p197 = scmp.ne.s32.totalorder %s182, %s196
      %p198 = scmp.eq.s32.totalorder %s25, 0
      %p199 = por %p197, %p198
      %s201 = sadd.s32 %s200, 1
      %p204 = scmp.eq.s32.totalorder %s19, 1
      %p205 = scmp.ne.s32.totalorder %s200, %s202
      %p206 = scmp.eq.s32.totalorder %s19, 0
      %p207 = por %p205, %p206
      %p208 = scmp.ne.s32.totalorder %s200, %s202
      %p209 = scmp.eq.s32.totalorder %s24, 1
      %p210 = por %p208, %p209
      %p211 = scmp.ne.s32.totalorder %s202, %s203
      %p212 = scmp.eq.s32.totalorder %s24, 0
      %p213 = por %p211, %p212
      %p214 = scmp.ne.s32.totalorder %s202, %s203
      %p215 = scmp.eq.s32.totalorder %s25, 1
      %p216 = por %p214, %p215
      %p218 = scmp.ne.s32.totalorder %s203, %s217
      %p219 = scmp.eq.s32.totalorder %s25, 0
      %p220 = por %p218, %p219
      %s222 = sadd.s32 %s221, 1
      %p225 = scmp.eq.s32.totalorder %s19, 1
      %p226 = scmp.ne.s32.totalorder %s221, %s223
      %p227 = scmp.eq.s32.totalorder %s19, 0
      %p228 = por %p226, %p227
      %p229 = scmp.ne.s32.totalorder %s221, %s223
      %p230 = scmp.eq.s32.totalorder %s24, 1
      %p231 = por %p229, %p230
      %p232 = scmp.ne.s32.totalorder %s223, %s224
      %p233 = scmp.eq.s32.totalorder %s24, 0
      %p234 = por %p232, %p233
      %p235 = scmp.ne.s32.totalorder %s223, %s224
      %p236 = scmp.eq.s32.totalorder %s25, 1
      %p237 = por %p235, %p236
      %p239 = scmp.ne.s32.totalorder %s224, %s238
      %p240 = scmp.eq.s32.totalorder %s25, 0
      %p241 = por %p239, %p240
      %s242 = ssub.s32 %s19, %s26
      %p243 = scmp.eq.s32.totalorder %s242, 0
      %s245 = sadd.s32 %s244, 1
      %s246 = scalar_select %p243, %s244, %s245
      %p249 = pneg %p243
      %p250 = scmp.eq.s32.totalorder %s19, 1
      %p251 = por %p249, %p250
      %p252 = scmp.ne.s32.totalorder %s244, %s247
      %p253 = scmp.eq.s32.totalorder %s19, 0
      %p254 = por %p252, %p253
      %p255 = scmp.ne.s32.totalorder %s244, %s247
      %p256 = scmp.eq.s32.totalorder %s24, 1
      %p257 = por %p255, %p256
      %p258 = scmp.ne.s32.totalorder %s247, %s248
      %p259 = scmp.eq.s32.totalorder %s24, 0
      %p260 = por %p258, %p259
      %p261 = scmp.ne.s32.totalorder %s247, %s248
      %p262 = scmp.eq.s32.totalorder %s25, 1
      %p263 = por %p261, %p262
      %p265 = scmp.ne.s32.totalorder %s248, %s264
      %p266 = scmp.eq.s32.totalorder %s25, 0
      %p267 = por %p265, %p266
      %p268 = scmp.le.s32.totalorder 1, %s19
      %p269 = scmp.lt.s32.totalorder %s19, 3
      %p270 = pnand %p268, %p269
      %p271 = pneg %p270
      // Predicated region
      $region9: #{tpu_custom_call.1} parent=5 // pred_check
        _
      $region10: #{tpu_custom_call.1} parent=5 // pred_check_branch
        %273 = sbr.rel (%p270) target = $region12
      $region11: #{tpu_custom_call.1} parent=5 // pred_region
        %s274 = ssub.s32 %s19, 1
        // Predicated region
        $region13: #{tpu_custom_call.1} parent=11 // pred_check
          %p275 = pneg %p66
        $region14: #{tpu_custom_call.1} parent=11 // pred_check_branch
          %277 = sbr.rel (%p275) target = $region16
        $region15: #{tpu_custom_call.1} parent=11 // pred_region
          _
        $region16: #{tpu_custom_call.1} parent=11 // pred_fallthru
          _
        // Predicated region
        $region17: #{tpu_custom_call.1} parent=11 // pred_check
          %p278 = pneg %p87
        $region18: #{tpu_custom_call.1} parent=11 // pred_check_branch
          %280 = sbr.rel (%p278) target = $region20
        $region19: #{tpu_custom_call.1} parent=11 // pred_region
          _
        $region20: #{tpu_custom_call.1} parent=11 // pred_fallthru
          _
        // Predicated region
        $region21: #{tpu_custom_call.1} parent=11 // pred_check
          %p281 = pneg %p108
        $region22: #{tpu_custom_call.1} parent=11 // pred_check_branch
          %283 = sbr.rel (%p281) target = $region24
        $region23: #{tpu_custom_call.1} parent=11 // pred_region
          _
        $region24: #{tpu_custom_call.1} parent=11 // pred_fallthru
          _
        // Predicated region
        $region25: #{tpu_custom_call.1} parent=11 // pred_check
          %p284 = pneg %p129
        $region26: #{tpu_custom_call.1} parent=11 // pred_check_branch
          %286 = sbr.rel (%p284) target = $region28
        $region27: #{tpu_custom_call.1} parent=11 // pred_region
          _
        $region28: #{tpu_custom_call.1} parent=11 // pred_fallthru
          _
        // Predicated region
        $region29: #{tpu_custom_call.1} parent=11 // pred_check
          %p287 = pneg %p150
        $region30: #{tpu_custom_call.1} parent=11 // pred_check_branch
          %289 = sbr.rel (%p287) target = $region32
        $region31: #{tpu_custom_call.1} parent=11 // pred_region
          _
        $region32: #{tpu_custom_call.1} parent=11 // pred_fallthru
          _
        // Predicated region
        $region33: #{tpu_custom_call.1} parent=11 // pred_check
          %p290 = pneg %p171
        $region34: #{tpu_custom_call.1} parent=11 // pred_check_branch
          %292 = sbr.rel (%p290) target = $region36
        $region35: #{tpu_custom_call.1} parent=11 // pred_region
          _
        $region36: #{tpu_custom_call.1} parent=11 // pred_fallthru
          _
        // Predicated region
        $region37: #{tpu_custom_call.1} parent=11 // pred_check
          %p293 = pneg %p192
        $region38: #{tpu_custom_call.1} parent=11 // pred_check_branch
          %295 = sbr.rel (%p293) target = $region40
        $region39: #{tpu_custom_call.1} parent=11 // pred_region
          _
        $region40: #{tpu_custom_call.1} parent=11 // pred_fallthru
          _
        // Predicated region
        $region41: #{tpu_custom_call.1} parent=11 // pred_check
          %p296 = pneg %p213
        $region42: #{tpu_custom_call.1} parent=11 // pred_check_branch
          %298 = sbr.rel (%p296) target = $region44
        $region43: #{tpu_custom_call.1} parent=11 // pred_region
          _
        $region44: #{tpu_custom_call.1} parent=11 // pred_fallthru
          _
        // Predicated region
        $region45: #{tpu_custom_call.1} parent=11 // pred_check
          %p299 = pneg %p234
        $region46: #{tpu_custom_call.1} parent=11 // pred_check_branch
          %301 = sbr.rel (%p299) target = $region48
        $region47: #{tpu_custom_call.1} parent=11 // pred_region
          _
        $region48: #{tpu_custom_call.1} parent=11 // pred_fallthru
          _
      $region12: #{tpu_custom_call.1} parent=5 // pred_fallthru
        _
      %p302 = scmp.lt.s32.totalorder %s19, 2
      // Predicated region
      $region49: #{tpu_custom_call.1} parent=5 // pred_check
        %p303 = pneg %p302
      $region50: #{tpu_custom_call.1} parent=5 // pred_check_branch
        %305 = sbr.rel (%p303) target = $region52
      $region51: #{tpu_custom_call.1} parent=5 // pred_region
        // Predicated region
        $region53: #{tpu_custom_call.1} parent=51 // pred_check
          %p306 = pneg %p39
        $region54: #{tpu_custom_call.1} parent=51 // pred_check_branch
          %308 = sbr.rel (%p306) target = $region56
        $region55: #{tpu_custom_call.1} parent=51 // pred_region
          %p309 = scmp.lt.s32.totalorder %s19, 1
          %s310 = scalar_select %p309, %s19, 1
          %s311 = smul.addr %s310, 8
          %s312 = scalar_lea.vmem %s0, %s311
        $region56: #{tpu_custom_call.1} parent=51 // pred_fallthru
          _
      $region52: #{tpu_custom_call.1} parent=5 // pred_fallthru
        _
      %p313 = scmp.le.s32.totalorder 1, %s19
      %p314 = scmp.lt.s32.totalorder %s19, 3
      %p315 = pnand %p313, %p314
      %p316 = pneg %p315
      // Predicated region
      $region57: #{tpu_custom_call.1} parent=5 // pred_check
        _
      $region58: #{tpu_custom_call.1} parent=5 // pred_check_branch
        %318 = sbr.rel (%p315) target = $region60
      $region59: #{tpu_custom_call.1} parent=5 // pred_region
        %s319 = ssub.s32 %s19, 1
        %p320 = scmp.lt.s32.totalorder %s24, 1
        %s321 = scalar_select %p320, %s24, 1
        %s322 = smul.addr %s321, 8
        %s323 = scalar_lea.vmem %s0, %s322
        %p324 = pneg %p45
        %p325 = pneg %p42
        %p326 = pneg %p66
        %p327 = pneg %p63
        %p328 = pneg %p87
        %p329 = pneg %p84
        %p330 = pneg %p108
        %p331 = pneg %p105
        %p332 = pneg %p129
        %p333 = pneg %p126
        %p334 = pneg %p150
        %p335 = pneg %p147
        %p336 = pneg %p171
        %p337 = pneg %p168
        %p338 = pneg %p192
        %p339 = pneg %p189
        %p340 = pneg %p213
        %p341 = pneg %p210
        %p342 = pneg %p234
        %p343 = pneg %p231
        %p344 = pneg %p260
        %p345 = pneg %p257
        %s346 = sand.u32 %s247, 1
        %s347 = scalar_lea.sflag [#allocation3], %s346
        %s348 = sand.u32 %s247, 1
        %s349 = smul.addr %s348, 8
        %s350 = scalar_lea.vmem [#allocation2], %s349
        %p351 = scmp.lt.s32.totalorder %s24, 1
        %s352 = scalar_select %p351, %s24, 1
        %s353 = smul.addr %s352, 8
        %s354 = scalar_lea.vmem %s0, %s353
        %v355 = vld [vmem:[%s354] sm:$0xff]
        %v356 = vld [vmem:[%s1] sm:$0xff]
        %v357 = vadd.f32 %v355, %v356
        %v358 = vlaneseq
        %v359 = vshrl.u32 %v358, 7
        %v360 = vlaneseq
        %v361 = vand.u32 %v360, 127
        %vm362 = vcmp.le.s32.totalorder %v361, %v359
        %v363 = vsel %vm362, 0.0, -1e+30
        %v364 = vld [vmem:[%s6] sm:$0xff]
        %vm365 = vcmask 261120
        %v366 = vsel %vm365, %v357, 0.0
        %367 = vadd.xlane.f32.xlu0 %v366
        %v368 = vpop.xlane.xlu0 %367
        %v369 = vrcp.pop 32.0
        %v370 = vmul.f32 32.0, %v369
        %v371 = vsub.f32 1.0, %v370
        %v372 = vmul.f32 %v369, %v371
        %v373 = vadd.f32 %v369, %v372
        %vm374 = vweird.f32 %v369
        %v375 = vsel %vm374, %v369, %v373
        %v376 = vmul.f32 %v368, %v375
        %v377 = vsub.f32 %v357, %v376
        %v378 = vmul.f32 %v377, %v377
        %v379 = vsel %vm365, %v378, 0.0
        %380 = vadd.xlane.f32.xlu0 %v379
        %v381 = vpop.xlane.xlu0 %380
        %v382 = vmul.f32 %v381, %v375
        %v383 = vadd.f32 %v382, 1e-05
        %v384 = vrsqrt.pop %v383
        %v385 = vmul.f32 %v384, %v383
        %v386 = vmul.f32 %v385, %v384
        %v387 = vmul.f32 0.5, %v386
        %v388 = vsub.f32 1.5, %v387
        %v389 = vmul.f32 %v384, %v388
        %vm390 = vweird.f32 %v383
        %vm391 = vweird.f32 %v384
        %vm392 = vmor %vm390, %vm391
        %v393 = vsel %vm392, %v384, %v389
        %v394 = vmul.f32 %v377, %v393
        %v395 = vperm.slane %v364, 0
        %v396 = vmul.f32 %v394, %v395
        %v397 = vperm.slane %v364, 1
        %v398 = vadd.f32 %v396, %v397
        %v399 = vld [vmem:[%s2] sm:$0xff]
        %v400 = vld [vmem:[%s2 + $0x8] sm:$0xff]
        %v401 = vld [vmem:[%s2 + $0x10] sm:$0xff]
        %v402 = vld [vmem:[%s2 + $0x18] sm:$0xff]
        %v403 = vperm.slane %v364, 2
        %v405 = vsel %vm365, %v398, 0
        %407 = vmatpush.msra.mxu0 0.0
        %408 = vmatpush.msra.mxu0 0.0
        %409 = vmatpush.msra.mxu0 0.0
        %410 = vmatpush.msra.mxu0 0.0
        %411 = vmatpush.msra.mxu0 0.0
        %412 = vmatpush.msra.mxu0 0.0
        %413 = vmatpush.msra.mxu0 0.0
        %414 = vmatpush.msra.mxu0 0.0
        %415 = vmatpush.msra.mxu0 0.0
        %416 = vmatpush.msra.mxu0 0.0
        %417 = vmatpush.msra.mxu0 0.0
        %418 = vmatpush.msra.mxu0 0.0
        %419 = vmatpush.msra.mxu0 %v402
        %420 = vmatpush.msra.mxu0 %v401
        %421 = vmatpush.msra.mxu0 %v400
        %422 = vmatpush.msra.mxu0 %v399
        %423 = vmatmul.f32.gmra.mxu0 %v405
        %v424 = vpop.f32.mrf.mxu0
        %v425 = vadd.f32 %v403, %v424
        %426 = vdwg.mxu0
        %428 = vrot.lane.b32.xlu0 %v425, 96
        %v429 = vpop.permute.xlu0 %428
        %vm430 = vcmask 64512
        %v431 = vsel %vm430, %v425, 0
        %v433 = vsel %vm430, %v429, 0
        %435 = vmatpush.xpose.msra.mxu0 0.0
        %436 = vmatpush.xpose.msra.mxu0 0.0
        %437 = vmatpush.xpose.msra.mxu0 0.0
        %438 = vmatpush.xpose.msra.mxu0 0.0
        %439 = vmatpush.xpose.msra.mxu0 0.0
        %440 = vmatpush.xpose.msra.mxu0 0.0
        %441 = vmatpush.xpose.msra.mxu0 0.0
        %442 = vmatpush.xpose.msra.mxu0 0.0
        %443 = vmatpush.xpose.msra.mxu0 0.0
        %444 = vmatpush.xpose.msra.mxu0 0.0
        %445 = vmatpush.xpose.msra.mxu0 0.0
        %446 = vmatpush.xpose.msra.mxu0 0.0
        %447 = vmatpush.xpose.msra.mxu0 0.0
        %448 = vmatpush.xpose.msra.mxu0 0.0
        %449 = vmatpush.xpose.msra.mxu0 0.0
        %450 = vmatpush.xpose.msra.mxu0 %v433
        %451 = vmatmul.f32.gmra.mxu0 %v431
        %v452 = vpop.f32.mrf.mxu0
        %v453 = vadd.f32 0.0, %v452
        %454 = vdwg.mxu0
        %455 = vrot.lane.b32.xlu0 %v425, 120
        %v456 = vpop.permute.xlu0 %455
        %457 = vrot.lane.b32.xlu0 %v425, 88
        %v458 = vpop.permute.xlu0 %457
        %v459 = vsel %vm430, %v456, 0
        %v461 = vsel %vm430, %v458, 0
        %463 = vmatpush.xpose.msra.mxu0 0.0
        %464 = vmatpush.xpose.msra.mxu0 0.0
        %465 = vmatpush.xpose.msra.mxu0 0.0
        %466 = vmatpush.xpose.msra.mxu0 0.0
        %467 = vmatpush.xpose.msra.mxu0 0.0
        %468 = vmatpush.xpose.msra.mxu0 0.0
        %469 = vmatpush.xpose.msra.mxu0 0.0
        %470 = vmatpush.xpose.msra.mxu0 0.0
        %471 = vmatpush.xpose.msra.mxu0 0.0
        %472 = vmatpush.xpose.msra.mxu0 0.0
        %473 = vmatpush.xpose.msra.mxu0 0.0
        %474 = vmatpush.xpose.msra.mxu0 0.0
        %475 = vmatpush.xpose.msra.mxu0 0.0
        %476 = vmatpush.xpose.msra.mxu0 0.0
        %477 = vmatpush.xpose.msra.mxu0 0.0
        %478 = vmatpush.xpose.msra.mxu0 %v461
        %479 = vmatmul.f32.gmra.mxu0 %v459
        %v480 = vpop.f32.mrf.mxu0
        %v481 = vadd.f32 0.0, %v480
        %482 = vdwg.mxu0
        %483 = vrot.lane.b32.xlu0 %v425, 112
        %v484 = vpop.permute.xlu0 %483
        %485 = vrot.lane.b32.xlu0 %v425, 80
        %v486 = vpop.permute.xlu0 %485
        %v487 = vsel %vm430, %v484, 0
        %v489 = vsel %vm430, %v486, 0
        %491 = vmatpush.xpose.msra.mxu0 0.0
        %492 = vmatpush.xpose.msra.mxu0 0.0
        %493 = vmatpush.xpose.msra.mxu0 0.0
        %494 = vmatpush.xpose.msra.mxu0 0.0
        %495 = vmatpush.xpose.msra.mxu0 0.0
        %496 = vmatpush.xpose.msra.mxu0 0.0
        %497 = vmatpush.xpose.msra.mxu0 0.0
        %498 = vmatpush.xpose.msra.mxu0 0.0
        %499 = vmatpush.xpose.msra.mxu0 0.0
        %500 = vmatpush.xpose.msra.mxu0 0.0
        %501 = vmatpush.xpose.msra.mxu0 0.0
        %502 = vmatpush.xpose.msra.mxu0 0.0
        %503 = vmatpush.xpose.msra.mxu0 0.0
        %504 = vmatpush.xpose.msra.mxu0 0.0
        %505 = vmatpush.xpose.msra.mxu0 0.0
        %506 = vmatpush.xpose.msra.mxu0 %v489
        %507 = vmatmul.f32.gmra.mxu0 %v487
        %v508 = vpop.f32.mrf.mxu0
        %v509 = vadd.f32 0.0, %v508
        %510 = vdwg.mxu0
        %511 = vrot.lane.b32.xlu0 %v425, 104
        %v512 = vpop.permute.xlu0 %511
        %513 = vrot.lane.b32.xlu0 %v425, 72
        %v514 = vpop.permute.xlu0 %513
        %v515 = vsel %vm430, %v512, 0
        %v517 = vsel %vm430, %v514, 0
        %519 = vmatpush.xpose.msra.mxu0 0.0
        %520 = vmatpush.xpose.msra.mxu0 0.0
        %521 = vmatpush.xpose.msra.mxu0 0.0
        %522 = vmatpush.xpose.msra.mxu0 0.0
        %523 = vmatpush.xpose.msra.mxu0 0.0
        %524 = vmatpush.xpose.msra.mxu0 0.0
        %525 = vmatpush.xpose.msra.mxu0 0.0
        %526 = vmatpush.xpose.msra.mxu0 0.0
        %527 = vmatpush.xpose.msra.mxu0 0.0
        %528 = vmatpush.xpose.msra.mxu0 0.0
        %529 = vmatpush.xpose.msra.mxu0 0.0
        %530 = vmatpush.xpose.msra.mxu0 0.0
        %531 = vmatpush.xpose.msra.mxu0 0.0
        %532 = vmatpush.xpose.msra.mxu0 0.0
        %533 = vmatpush.xpose.msra.mxu0 0.0
        %534 = vmatpush.xpose.msra.mxu0 %v517
        %535 = vmatmul.f32.gmra.mxu0 %v515
        %v536 = vpop.f32.mrf.mxu0
        %v537 = vadd.f32 0.0, %v536
        %538 = vdwg.mxu0
        %v539 = vadd.f32 %v453, %v363
        %v540 = vadd.f32 %v481, %v363
        %v541 = vadd.f32 %v509, %v363
        %v542 = vadd.f32 %v537, %v363
        %v543 = vsel %vm430, %v539, -inf
        %544 = vmax.xlane.f32.xlu0 %v543
        %v545 = vpop.xlane.xlu0 %544
        %v546 = vsel %vm430, %v540, -inf
        %547 = vmax.xlane.f32.xlu0 %v546
        %v548 = vpop.xlane.xlu0 %547
        %v549 = vsel %vm430, %v541, -inf
        %550 = vmax.xlane.f32.xlu0 %v549
        %v551 = vpop.xlane.xlu0 %550
        %v552 = vsel %vm430, %v542, -inf
        %553 = vmax.xlane.f32.xlu0 %v552
        %v554 = vpop.xlane.xlu0 %553
        %v555 = vsub.f32 %v539, %v545
        %v556 = vsub.f32 %v540, %v548
        %v557 = vsub.f32 %v541, %v551
        %v558 = vsub.f32 %v542, %v554
        %v559 = vmul.f32 %v555, 1.442695
        %v560 = vpow.pop %v559
        %v561 = vmul.f32 %v556, 1.442695
        %v562 = vpow.pop %v561
        %v563 = vmul.f32 %v557, 1.442695
        %v564 = vpow.pop %v563
        %v565 = vmul.f32 %v558, 1.442695
        %v566 = vpow.pop %v565
        %v567 = vsel %vm430, %v560, 0.0
        %568 = vadd.xlane.f32.xlu0 %v567
        %v569 = vpop.xlane.xlu0 %568
        %v570 = vsel %vm430, %v562, 0.0
        %571 = vadd.xlane.f32.xlu0 %v570
        %v572 = vpop.xlane.xlu0 %571
        %v573 = vsel %vm430, %v564, 0.0
        %574 = vadd.xlane.f32.xlu0 %v573
        %v575 = vpop.xlane.xlu0 %574
        %v576 = vsel %vm430, %v566, 0.0
        %577 = vadd.xlane.f32.xlu0 %v576
        %v578 = vpop.xlane.xlu0 %577
        %v579 = vrcp.pop %v569
        %v580 = vrcp.pop %v572
        %v581 = vrcp.pop %v575
        %v582 = vrcp.pop %v578
        %v583 = vmul.f32 %v560, %v579
        %v584 = vmul.f32 %v562, %v580
        %v585 = vmul.f32 %v564, %v581
        %v586 = vmul.f32 %v566, %v582
        %587 = vrot.lane.b32.xlu0 %v425, 64
        %v588 = vpop.permute.xlu0 %587
        %v591 = vsel %vm430, %v583, 0
        %593 = vmatpush.msra.mxu0 0.0
        %594 = vmatpush.msra.mxu0 0.0
        %595 = vmatpush.msra.mxu0 0.0
        %596 = vmatpush.msra.mxu0 0.0
        %597 = vmatpush.msra.mxu0 0.0
        %598 = vmatpush.msra.mxu0 0.0
        %599 = vmatpush.msra.mxu0 0.0
        %600 = vmatpush.msra.mxu0 0.0
        %601 = vmatpush.msra.mxu0 0.0
        %602 = vmatpush.msra.mxu0 0.0
        %603 = vmatpush.msra.mxu0 0.0
        %604 = vmatpush.msra.mxu0 0.0
        %605 = vmatpush.msra.mxu0 0.0
        %606 = vmatpush.msra.mxu0 0.0
        %607 = vmatpush.msra.mxu0 0.0
        %608 = vmatpush.msra.mxu0 %v588
        %609 = vmatmul.f32.gmra.mxu0 %v591
        %v610 = vpop.f32.mrf.mxu0
        %v611 = vadd.f32 0.0, %v610
        %612 = vdwg.mxu0
        %613 = vrot.lane.b32.xlu0 %v425, 56
        %v614 = vpop.permute.xlu0 %613
        %v617 = vsel %vm430, %v584, 0
        %619 = vmatpush.msra.mxu0 0.0
        %620 = vmatpush.msra.mxu0 0.0
        %621 = vmatpush.msra.mxu0 0.0
        %622 = vmatpush.msra.mxu0 0.0
        %623 = vmatpush.msra.mxu0 0.0
        %624 = vmatpush.msra.mxu0 0.0
        %625 = vmatpush.msra.mxu0 0.0
        %626 = vmatpush.msra.mxu0 0.0
        %627 = vmatpush.msra.mxu0 0.0
        %628 = vmatpush.msra.mxu0 0.0
        %629 = vmatpush.msra.mxu0 0.0
        %630 = vmatpush.msra.mxu0 0.0
        %631 = vmatpush.msra.mxu0 0.0
        %632 = vmatpush.msra.mxu0 0.0
        %633 = vmatpush.msra.mxu0 0.0
        %634 = vmatpush.msra.mxu0 %v614
        %635 = vmatmul.f32.gmra.mxu0 %v617
        %v636 = vpop.f32.mrf.mxu0
        %v637 = vadd.f32 0.0, %v636
        %638 = vdwg.mxu0
        %639 = vrot.lane.b32.xlu0 %v425, 48
        %v640 = vpop.permute.xlu0 %639
        %v643 = vsel %vm430, %v585, 0
        %645 = vmatpush.msra.mxu0 0.0
        %646 = vmatpush.msra.mxu0 0.0
        %647 = vmatpush.msra.mxu0 0.0
        %648 = vmatpush.msra.mxu0 0.0
        %649 = vmatpush.msra.mxu0 0.0
        %650 = vmatpush.msra.mxu0 0.0
        %651 = vmatpush.msra.mxu0 0.0
        %652 = vmatpush.msra.mxu0 0.0
        %653 = vmatpush.msra.mxu0 0.0
        %654 = vmatpush.msra.mxu0 0.0
        %655 = vmatpush.msra.mxu0 0.0
        %656 = vmatpush.msra.mxu0 0.0
        %657 = vmatpush.msra.mxu0 0.0
        %658 = vmatpush.msra.mxu0 0.0
        %659 = vmatpush.msra.mxu0 0.0
        %660 = vmatpush.msra.mxu0 %v640
        %661 = vmatmul.f32.gmra.mxu0 %v643
        %v662 = vpop.f32.mrf.mxu0
        %v663 = vadd.f32 0.0, %v662
        %664 = vdwg.mxu0
        %665 = vrot.lane.b32.xlu0 %v425, 40
        %v666 = vpop.permute.xlu0 %665
        %v669 = vsel %vm430, %v586, 0
        %671 = vmatpush.msra.mxu0 0.0
        %672 = vmatpush.msra.mxu0 0.0
        %673 = vmatpush.msra.mxu0 0.0
        %674 = vmatpush.msra.mxu0 0.0
        %675 = vmatpush.msra.mxu0 0.0
        %676 = vmatpush.msra.mxu0 0.0
        %677 = vmatpush.msra.mxu0 0.0
        %678 = vmatpush.msra.mxu0 0.0
        %679 = vmatpush.msra.mxu0 0.0
        %680 = vmatpush.msra.mxu0 0.0
        %681 = vmatpush.msra.mxu0 0.0
        %682 = vmatpush.msra.mxu0 0.0
        %683 = vmatpush.msra.mxu0 0.0
        %684 = vmatpush.msra.mxu0 0.0
        %685 = vmatpush.msra.mxu0 0.0
        %686 = vmatpush.msra.mxu0 %v666
        %687 = vmatmul.f32.gmra.mxu0 %v669
        %v688 = vpop.f32.mrf.mxu0
        %v689 = vadd.f32 0.0, %v688
        %690 = vdwg.mxu0
        %692 = vrot.lane.b32.xlu0 %v637, 8
        %v693 = vpop.permute.xlu0 %692
        %696 = vrot.lane.b32.xlu0 %v663, 16
        %v697 = vpop.permute.xlu0 %696
        %700 = vrot.lane.b32.xlu0 %v689, 24
        %v701 = vpop.permute.xlu0 %700
        %v703 = vsel %vm430, %v611, %v693
        %vm704 = vcmask 130048
        %v705 = vsel %vm704, %v703, %v697
        %vm706 = vcmask 195584
        %v707 = vsel %vm706, %v705, %v701
        %v708 = vld [vmem:[%s3] sm:$0xff]
        %v709 = vld [vmem:[%s3 + $0x8] sm:$0xff]
        %v710 = vld [vmem:[%s3 + $0x10] sm:$0xff]
        %v711 = vld [vmem:[%s3 + $0x18] sm:$0xff]
        %v713 = vsel %vm365, %v707, 0
        %715 = vmatpush.msra.mxu0 0.0
        %716 = vmatpush.msra.mxu0 0.0
        %717 = vmatpush.msra.mxu0 0.0
        %718 = vmatpush.msra.mxu0 0.0
        %719 = vmatpush.msra.mxu0 0.0
        %720 = vmatpush.msra.mxu0 0.0
        %721 = vmatpush.msra.mxu0 0.0
        %722 = vmatpush.msra.mxu0 0.0
        %723 = vmatpush.msra.mxu0 0.0
        %724 = vmatpush.msra.mxu0 0.0
        %725 = vmatpush.msra.mxu0 0.0
        %726 = vmatpush.msra.mxu0 0.0
        %727 = vmatpush.msra.mxu0 %v711
        %728 = vmatpush.msra.mxu0 %v710
        %729 = vmatpush.msra.mxu0 %v709
        %730 = vmatpush.msra.mxu0 %v708
        %731 = vmatmul.f32.gmra.mxu0 %v713
        %v732 = vpop.f32.mrf.mxu0
        %v733 = vadd.f32 0.0, %v732
        %734 = vdwg.mxu0
        %v735 = vadd.f32 %v357, %v733
        %v736 = vperm.slane %v364, 3
        %v737 = vadd.f32 %v735, %v736
        %v738 = vsel %vm365, %v737, 0.0
        %739 = vadd.xlane.f32.xlu0 %v738
        %v740 = vpop.xlane.xlu0 %739
        %v741 = vmul.f32 %v740, %v375
        %v742 = vsub.f32 %v737, %v741
        %v743 = vmul.f32 %v742, %v742
        %v744 = vsel %vm365, %v743, 0.0
        %745 = vadd.xlane.f32.xlu0 %v744
        %v746 = vpop.xlane.xlu0 %745
        %v747 = vmul.f32 %v746, %v375
        %v748 = vadd.f32 %v747, 1e-05
        %v749 = vrsqrt.pop %v748
        %v750 = vmul.f32 %v749, %v748
        %v751 = vmul.f32 %v750, %v749
        %v752 = vmul.f32 0.5, %v751
        %v753 = vsub.f32 1.5, %v752
        %v754 = vmul.f32 %v749, %v753
        %vm755 = vweird.f32 %v748
        %vm756 = vweird.f32 %v749
        %vm757 = vmor %vm755, %vm756
        %v758 = vsel %vm757, %v749, %v754
        %v759 = vmul.f32 %v742, %v758
        %v760 = vperm.slane %v364, 4
        %v761 = vmul.f32 %v759, %v760
        %v762 = vperm.slane %v364, 5
        %v763 = vadd.f32 %v761, %v762
        %v764 = vld [vmem:[%s4] sm:$0xff]
        %v765 = vld [vmem:[%s4 + $0x8] sm:$0xff]
        %v766 = vld [vmem:[%s4 + $0x10] sm:$0xff]
        %v767 = vld [vmem:[%s4 + $0x18] sm:$0xff]
        %v768 = vperm.slane %v364, 6
        %v770 = vsel %vm365, %v763, 0
        %772 = vmatpush.msra.mxu0 0.0
        %773 = vmatpush.msra.mxu0 0.0
        %774 = vmatpush.msra.mxu0 0.0
        %775 = vmatpush.msra.mxu0 0.0
        %776 = vmatpush.msra.mxu0 0.0
        %777 = vmatpush.msra.mxu0 0.0
        %778 = vmatpush.msra.mxu0 0.0
        %779 = vmatpush.msra.mxu0 0.0
        %780 = vmatpush.msra.mxu0 0.0
        %781 = vmatpush.msra.mxu0 0.0
        %782 = vmatpush.msra.mxu0 0.0
        %783 = vmatpush.msra.mxu0 0.0
        %784 = vmatpush.msra.mxu0 %v767
        %785 = vmatpush.msra.mxu0 %v766
        %786 = vmatpush.msra.mxu0 %v765
        %787 = vmatpush.msra.mxu0 %v764
        %788 = vmatmul.f32.gmra.mxu0 %v770
        %v789 = vpop.f32.mrf.mxu0
        %v790 = vadd.f32 %v768, %v789
        %791 = vdwg.mxu0
        %v792 = vmul.f32 %v790, 0.5
        %v793 = vmul.f32 %v790, 0.70710677
        %v794 = vmul.f32 %v793, %v793
        %v795 = vmin.f32 16.0, %v794
        %v796 = vmul.f32 %v795, 2.1237322e-06
        %v797 = vadd.f32 %v796, 0.00028619796
        %v798 = vmul.f32 %v795, %v797
        %v799 = vadd.f32 %v798, 0.0036580483
        %v800 = vmul.f32 %v795, %v799
        %v801 = vadd.f32 %v800, 0.05243302
        %v802 = vmul.f32 %v795, %v801
        %v803 = vadd.f32 %v802, 0.18741608
        %v804 = vmul.f32 %v795, %v803
        %v805 = vadd.f32 %v804, 1.1283791
        %v806 = vmul.f32 %v793, %v805
        %v807 = vmul.f32 %v795, 3.8918573e-05
        %v808 = vadd.f32 %v807, 0.001143296
        %v809 = vmul.f32 %v795, %v808
        %v810 = vadd.f32 %v809, 0.014752088
        %v811 = vmul.f32 %v795, %v810
        %v812 = vadd.f32 %v811, 0.112945676
        %v813 = vmul.f32 %v795, %v812
        %v814 = vadd.f32 %v813, 0.4994258
        %v815 = vmul.f32 %v795, %v814
        %v816 = vadd.f32 %v815, 1.0
        %v817 = vrcp.pop %v816
        %v818 = vmul.f32 %v816, %v817
        %v819 = vsub.f32 1.0, %v818
        %v820 = vmul.f32 %v817, %v819
        %v821 = vadd.f32 %v817, %v820
        %vm822 = vweird.f32 %v816
        %vm823 = vweird.f32 %v817
        %vm824 = vmor %vm822, %vm823
        %v825 = vsel %vm824, %v817, %v821
        %v826 = vand.u32 2147483647, %v816
        %vm827 = vcmp.eq.f32.partialorder %v826, 8.507059e+37
        %v828 = vand.u32 %v816, 2147483648
        %v829 = vor.u32 1.1754944e-38, %v828
        %v830 = vsel %vm827, %v829, %v825
        %v831 = vmul.f32 %v806, %v830
        %v832 = vmin.f32 %v831, 1.0
        %v833 = vmax.f32 %v832, -1.0
        %v834 = vadd.f32 %v833, 1.0
        %v835 = vmul.f32 %v792, %v834
        %v836 = vld [vmem:[%s5] sm:$0xff]
        %v837 = vld [vmem:[%s5 + $0x8] sm:$0xff]
        %v838 = vld [vmem:[%s5 + $0x10] sm:$0xff]
        %v839 = vld [vmem:[%s5 + $0x18] sm:$0xff]
        %v840 = vld [vmem:[%s5 + $0x20] sm:$0xff]
        %v841 = vld [vmem:[%s5 + $0x28] sm:$0xff]
        %v842 = vld [vmem:[%s5 + $0x30] sm:$0xff]
        %v843 = vld [vmem:[%s5 + $0x38] sm:$0xff]
        %vm844 = vcmask 523264
        %v846 = vsel %vm844, %v835, 0
        %848 = vmatpush.msra.mxu0 0.0
        %849 = vmatpush.msra.mxu0 0.0
        %850 = vmatpush.msra.mxu0 0.0
        %851 = vmatpush.msra.mxu0 0.0
        %852 = vmatpush.msra.mxu0 0.0
        %853 = vmatpush.msra.mxu0 0.0
        %854 = vmatpush.msra.mxu0 0.0
        %855 = vmatpush.msra.mxu0 0.0
        %856 = vmatpush.msra.mxu0 %v843
        %857 = vmatpush.msra.mxu0 %v842
        %858 = vmatpush.msra.mxu0 %v841
        %859 = vmatpush.msra.mxu0 %v840
        %860 = vmatpush.msra.mxu0 %v839
        %861 = vmatpush.msra.mxu0 %v838
        %862 = vmatpush.msra.mxu0 %v837
        %863 = vmatpush.msra.mxu0 %v836
        %864 = vmatmul.f32.gmra.mxu0 %v846
        %v865 = vpop.f32.mrf.mxu0
        %v866 = vadd.f32 0.0, %v865
        %867 = vdwg.mxu0
        %v868 = vadd.f32 %v737, %v866
        %v869 = vperm.slane %v364, 7
        %v870 = vadd.f32 %v868, %v869
        %s871 = scalar_lea.vmem %s6, 8
        %v872 = vld [vmem:[%s871] sm:$0xff]
        %v873 = vsel %vm365, %v870, 0.0
        %874 = vadd.xlane.f32.xlu0 %v873
        %v875 = vpop.xlane.xlu0 %874
        %v876 = vmul.f32 %v875, %v375
        %v877 = vsub.f32 %v870, %v876
        %v878 = vmul.f32 %v877, %v877
        %v879 = vsel %vm365, %v878, 0.0
        %880 = vadd.xlane.f32.xlu0 %v879
        %v881 = vpop.xlane.xlu0 %880
        %v882 = vmul.f32 %v881, %v375
        %v883 = vadd.f32 %v882, 1e-05
        %v884 = vrsqrt.pop %v883
        %v885 = vmul.f32 %v884, %v883
        %v886 = vmul.f32 %v885, %v884
        %v887 = vmul.f32 0.5, %v886
        %v888 = vsub.f32 1.5, %v887
        %v889 = vmul.f32 %v884, %v888
        %vm890 = vweird.f32 %v883
        %vm891 = vweird.f32 %v884
        %vm892 = vmor %vm890, %vm891
        %v893 = vsel %vm892, %v884, %v889
        %v894 = vmul.f32 %v877, %v893
        %v895 = vperm.slane %v872, 0
        %v896 = vmul.f32 %v894, %v895
        %v897 = vperm.slane %v872, 1
        %v898 = vadd.f32 %v896, %v897
        %s899 = scalar_lea.vmem %s2, 32
        %v900 = vld [vmem:[%s899] sm:$0xff]
        %v901 = vld [vmem:[%s899 + $0x8] sm:$0xff]
        %v902 = vld [vmem:[%s899 + $0x10] sm:$0xff]
        %v903 = vld [vmem:[%s899 + $0x18] sm:$0xff]
        %v904 = vperm.slane %v872, 2
        %v906 = vsel %vm365, %v898, 0
        %908 = vmatpush.msra.mxu0 0.0
        %909 = vmatpush.msra.mxu0 0.0
        %910 = vmatpush.msra.mxu0 0.0
        %911 = vmatpush.msra.mxu0 0.0
        %912 = vmatpush.msra.mxu0 0.0
        %913 = vmatpush.msra.mxu0 0.0
        %914 = vmatpush.msra.mxu0 0.0
        %915 = vmatpush.msra.mxu0 0.0
        %916 = vmatpush.msra.mxu0 0.0
        %917 = vmatpush.msra.mxu0 0.0
        %918 = vmatpush.msra.mxu0 0.0
        %919 = vmatpush.msra.mxu0 0.0
        %920 = vmatpush.msra.mxu0 %v903
        %921 = vmatpush.msra.mxu0 %v902
        %922 = vmatpush.msra.mxu0 %v901
        %923 = vmatpush.msra.mxu0 %v900
        %924 = vmatmul.f32.gmra.mxu0 %v906
        %v925 = vpop.f32.mrf.mxu0
        %v926 = vadd.f32 %v904, %v925
        %927 = vdwg.mxu0
        %929 = vrot.lane.b32.xlu0 %v926, 96
        %v930 = vpop.permute.xlu0 %929
        %v931 = vsel %vm430, %v926, 0
        %v933 = vsel %vm430, %v930, 0
        %935 = vmatpush.xpose.msra.mxu0 0.0
        %936 = vmatpush.xpose.msra.mxu0 0.0
        %937 = vmatpush.xpose.msra.mxu0 0.0
        %938 = vmatpush.xpose.msra.mxu0 0.0
        %939 = vmatpush.xpose.msra.mxu0 0.0
        %940 = vmatpush.xpose.msra.mxu0 0.0
        %941 = vmatpush.xpose.msra.mxu0 0.0
        %942 = vmatpush.xpose.msra.mxu0 0.0
        %943 = vmatpush.xpose.msra.mxu0 0.0
        %944 = vmatpush.xpose.msra.mxu0 0.0
        %945 = vmatpush.xpose.msra.mxu0 0.0
        %946 = vmatpush.xpose.msra.mxu0 0.0
        %947 = vmatpush.xpose.msra.mxu0 0.0
        %948 = vmatpush.xpose.msra.mxu0 0.0
        %949 = vmatpush.xpose.msra.mxu0 0.0
        %950 = vmatpush.xpose.msra.mxu0 %v933
        %951 = vmatmul.f32.gmra.mxu0 %v931
        %v952 = vpop.f32.mrf.mxu0
        %v953 = vadd.f32 0.0, %v952
        %954 = vdwg.mxu0
        %955 = vrot.lane.b32.xlu0 %v926, 120
        %v956 = vpop.permute.xlu0 %955
        %957 = vrot.lane.b32.xlu0 %v926, 88
        %v958 = vpop.permute.xlu0 %957
        %v959 = vsel %vm430, %v956, 0
        %v961 = vsel %vm430, %v958, 0
        %963 = vmatpush.xpose.msra.mxu0 0.0
        %964 = vmatpush.xpose.msra.mxu0 0.0
        %965 = vmatpush.xpose.msra.mxu0 0.0
        %966 = vmatpush.xpose.msra.mxu0 0.0
        %967 = vmatpush.xpose.msra.mxu0 0.0
        %968 = vmatpush.xpose.msra.mxu0 0.0
        %969 = vmatpush.xpose.msra.mxu0 0.0
        %970 = vmatpush.xpose.msra.mxu0 0.0
        %971 = vmatpush.xpose.msra.mxu0 0.0
        %972 = vmatpush.xpose.msra.mxu0 0.0
        %973 = vmatpush.xpose.msra.mxu0 0.0
        %974 = vmatpush.xpose.msra.mxu0 0.0
        %975 = vmatpush.xpose.msra.mxu0 0.0
        %976 = vmatpush.xpose.msra.mxu0 0.0
        %977 = vmatpush.xpose.msra.mxu0 0.0
        %978 = vmatpush.xpose.msra.mxu0 %v961
        %979 = vmatmul.f32.gmra.mxu0 %v959
        %v980 = vpop.f32.mrf.mxu0
        %v981 = vadd.f32 0.0, %v980
        %982 = vdwg.mxu0
        %983 = vrot.lane.b32.xlu0 %v926, 112
        %v984 = vpop.permute.xlu0 %983
        %985 = vrot.lane.b32.xlu0 %v926, 80
        %v986 = vpop.permute.xlu0 %985
        %v987 = vsel %vm430, %v984, 0
        %v989 = vsel %vm430, %v986, 0
        %991 = vmatpush.xpose.msra.mxu0 0.0
        %992 = vmatpush.xpose.msra.mxu0 0.0
        %993 = vmatpush.xpose.msra.mxu0 0.0
        %994 = vmatpush.xpose.msra.mxu0 0.0
        %995 = vmatpush.xpose.msra.mxu0 0.0
        %996 = vmatpush.xpose.msra.mxu0 0.0
        %997 = vmatpush.xpose.msra.mxu0 0.0
        %998 = vmatpush.xpose.msra.mxu0 0.0
        %999 = vmatpush.xpose.msra.mxu0 0.0
        %1000 = vmatpush.xpose.msra.mxu0 0.0
        %1001 = vmatpush.xpose.msra.mxu0 0.0
        %1002 = vmatpush.xpose.msra.mxu0 0.0
        %1003 = vmatpush.xpose.msra.mxu0 0.0
        %1004 = vmatpush.xpose.msra.mxu0 0.0
        %1005 = vmatpush.xpose.msra.mxu0 0.0
        %1006 = vmatpush.xpose.msra.mxu0 %v989
        %1007 = vmatmul.f32.gmra.mxu0 %v987
        %v1008 = vpop.f32.mrf.mxu0
        %v1009 = vadd.f32 0.0, %v1008
        %1010 = vdwg.mxu0
        %1011 = vrot.lane.b32.xlu0 %v926, 104
        %v1012 = vpop.permute.xlu0 %1011
        %1013 = vrot.lane.b32.xlu0 %v926, 72
        %v1014 = vpop.permute.xlu0 %1013
        %v1015 = vsel %vm430, %v1012, 0
        %v1017 = vsel %vm430, %v1014, 0
        %1019 = vmatpush.xpose.msra.mxu0 0.0
        %1020 = vmatpush.xpose.msra.mxu0 0.0
        %1021 = vmatpush.xpose.msra.mxu0 0.0
        %1022 = vmatpush.xpose.msra.mxu0 0.0
        %1023 = vmatpush.xpose.msra.mxu0 0.0
        %1024 = vmatpush.xpose.msra.mxu0 0.0
        %1025 = vmatpush.xpose.msra.mxu0 0.0
        %1026 = vmatpush.xpose.msra.mxu0 0.0
        %1027 = vmatpush.xpose.msra.mxu0 0.0
        %1028 = vmatpush.xpose.msra.mxu0 0.0
        %1029 = vmatpush.xpose.msra.mxu0 0.0
        %1030 = vmatpush.xpose.msra.mxu0 0.0
        %1031 = vmatpush.xpose.msra.mxu0 0.0
        %1032 = vmatpush.xpose.msra.mxu0 0.0
        %1033 = vmatpush.xpose.msra.mxu0 0.0
        %1034 = vmatpush.xpose.msra.mxu0 %v1017
        %1035 = vmatmul.f32.gmra.mxu0 %v1015
        %v1036 = vpop.f32.mrf.mxu0
        %v1037 = vadd.f32 0.0, %v1036
        %1038 = vdwg.mxu0
        %v1039 = vadd.f32 %v953, %v363
        %v1040 = vadd.f32 %v981, %v363
        %v1041 = vadd.f32 %v1009, %v363
        %v1042 = vadd.f32 %v1037, %v363
        %v1043 = vsel %vm430, %v1039, -inf
        %1044 = vmax.xlane.f32.xlu0 %v1043
        %v1045 = vpop.xlane.xlu0 %1044
        %v1046 = vsel %vm430, %v1040, -inf
        %1047 = vmax.xlane.f32.xlu0 %v1046
        %v1048 = vpop.xlane.xlu0 %1047
        %v1049 = vsel %vm430, %v1041, -inf
        %1050 = vmax.xlane.f32.xlu0 %v1049
        %v1051 = vpop.xlane.xlu0 %1050
        %v1052 = vsel %vm430, %v1042, -inf
        %1053 = vmax.xlane.f32.xlu0 %v1052
        %v1054 = vpop.xlane.xlu0 %1053
        %v1055 = vsub.f32 %v1039, %v1045
        %v1056 = vsub.f32 %v1040, %v1048
        %v1057 = vsub.f32 %v1041, %v1051
        %v1058 = vsub.f32 %v1042, %v1054
        %v1059 = vmul.f32 %v1055, 1.442695
        %v1060 = vpow.pop %v1059
        %v1061 = vmul.f32 %v1056, 1.442695
        %v1062 = vpow.pop %v1061
        %v1063 = vmul.f32 %v1057, 1.442695
        %v1064 = vpow.pop %v1063
        %v1065 = vmul.f32 %v1058, 1.442695
        %v1066 = vpow.pop %v1065
        %v1067 = vsel %vm430, %v1060, 0.0
        %1068 = vadd.xlane.f32.xlu0 %v1067
        %v1069 = vpop.xlane.xlu0 %1068
        %v1070 = vsel %vm430, %v1062, 0.0
        %1071 = vadd.xlane.f32.xlu0 %v1070
        %v1072 = vpop.xlane.xlu0 %1071
        %v1073 = vsel %vm430, %v1064, 0.0
        %1074 = vadd.xlane.f32.xlu0 %v1073
        %v1075 = vpop.xlane.xlu0 %1074
        %v1076 = vsel %vm430, %v1066, 0.0
        %1077 = vadd.xlane.f32.xlu0 %v1076
        %v1078 = vpop.xlane.xlu0 %1077
        %v1079 = vrcp.pop %v1069
        %v1080 = vrcp.pop %v1072
        %v1081 = vrcp.pop %v1075
        %v1082 = vrcp.pop %v1078
        %v1083 = vmul.f32 %v1060, %v1079
        %v1084 = vmul.f32 %v1062, %v1080
        %v1085 = vmul.f32 %v1064, %v1081
        %v1086 = vmul.f32 %v1066, %v1082
        %1087 = vrot.lane.b32.xlu0 %v926, 64
        %v1088 = vpop.permute.xlu0 %1087
        %v1091 = vsel %vm430, %v1083, 0
        %1093 = vmatpush.msra.mxu0 0.0
        %1094 = vmatpush.msra.mxu0 0.0
        %1095 = vmatpush.msra.mxu0 0.0
        %1096 = vmatpush.msra.mxu0 0.0
        %1097 = vmatpush.msra.mxu0 0.0
        %1098 = vmatpush.msra.mxu0 0.0
        %1099 = vmatpush.msra.mxu0 0.0
        %1100 = vmatpush.msra.mxu0 0.0
        %1101 = vmatpush.msra.mxu0 0.0
        %1102 = vmatpush.msra.mxu0 0.0
        %1103 = vmatpush.msra.mxu0 0.0
        %1104 = vmatpush.msra.mxu0 0.0
        %1105 = vmatpush.msra.mxu0 0.0
        %1106 = vmatpush.msra.mxu0 0.0
        %1107 = vmatpush.msra.mxu0 0.0
        %1108 = vmatpush.msra.mxu0 %v1088
        %1109 = vmatmul.f32.gmra.mxu0 %v1091
        %v1110 = vpop.f32.mrf.mxu0
        %v1111 = vadd.f32 0.0, %v1110
        %1112 = vdwg.mxu0
        %1113 = vrot.lane.b32.xlu0 %v926, 56
        %v1114 = vpop.permute.xlu0 %1113
        %v1117 = vsel %vm430, %v1084, 0
        %1119 = vmatpush.msra.mxu0 0.0
        %1120 = vmatpush.msra.mxu0 0.0
        %1121 = vmatpush.msra.mxu0 0.0
        %1122 = vmatpush.msra.mxu0 0.0
        %1123 = vmatpush.msra.mxu0 0.0
        %1124 = vmatpush.msra.mxu0 0.0
        %1125 = vmatpush.msra.mxu0 0.0
        %1126 = vmatpush.msra.mxu0 0.0
        %1127 = vmatpush.msra.mxu0 0.0
        %1128 = vmatpush.msra.mxu0 0.0
        %1129 = vmatpush.msra.mxu0 0.0
        %1130 = vmatpush.msra.mxu0 0.0
        %1131 = vmatpush.msra.mxu0 0.0
        %1132 = vmatpush.msra.mxu0 0.0
        %1133 = vmatpush.msra.mxu0 0.0
        %1134 = vmatpush.msra.mxu0 %v1114
        %1135 = vmatmul.f32.gmra.mxu0 %v1117
        %v1136 = vpop.f32.mrf.mxu0
        %v1137 = vadd.f32 0.0, %v1136
        %1138 = vdwg.mxu0
        %1139 = vrot.lane.b32.xlu0 %v926, 48
        %v1140 = vpop.permute.xlu0 %1139
        %v1143 = vsel %vm430, %v1085, 0
        %1145 = vmatpush.msra.mxu0 0.0
        %1146 = vmatpush.msra.mxu0 0.0
        %1147 = vmatpush.msra.mxu0 0.0
        %1148 = vmatpush.msra.mxu0 0.0
        %1149 = vmatpush.msra.mxu0 0.0
        %1150 = vmatpush.msra.mxu0 0.0
        %1151 = vmatpush.msra.mxu0 0.0
        %1152 = vmatpush.msra.mxu0 0.0
        %1153 = vmatpush.msra.mxu0 0.0
        %1154 = vmatpush.msra.mxu0 0.0
        %1155 = vmatpush.msra.mxu0 0.0
        %1156 = vmatpush.msra.mxu0 0.0
        %1157 = vmatpush.msra.mxu0 0.0
        %1158 = vmatpush.msra.mxu0 0.0
        %1159 = vmatpush.msra.mxu0 0.0
        %1160 = vmatpush.msra.mxu0 %v1140
        %1161 = vmatmul.f32.gmra.mxu0 %v1143
        %v1162 = vpop.f32.mrf.mxu0
        %v1163 = vadd.f32 0.0, %v1162
        %1164 = vdwg.mxu0
        %1165 = vrot.lane.b32.xlu0 %v926, 40
        %v1166 = vpop.permute.xlu0 %1165
        %v1169 = vsel %vm430, %v1086, 0
        %1171 = vmatpush.msra.mxu0 0.0
        %1172 = vmatpush.msra.mxu0 0.0
        %1173 = vmatpush.msra.mxu0 0.0
        %1174 = vmatpush.msra.mxu0 0.0
        %1175 = vmatpush.msra.mxu0 0.0
        %1176 = vmatpush.msra.mxu0 0.0
        %1177 = vmatpush.msra.mxu0 0.0
        %1178 = vmatpush.msra.mxu0 0.0
        %1179 = vmatpush.msra.mxu0 0.0
        %1180 = vmatpush.msra.mxu0 0.0
        %1181 = vmatpush.msra.mxu0 0.0
        %1182 = vmatpush.msra.mxu0 0.0
        %1183 = vmatpush.msra.mxu0 0.0
        %1184 = vmatpush.msra.mxu0 0.0
        %1185 = vmatpush.msra.mxu0 0.0
        %1186 = vmatpush.msra.mxu0 %v1166
        %1187 = vmatmul.f32.gmra.mxu0 %v1169
        %v1188 = vpop.f32.mrf.mxu0
        %v1189 = vadd.f32 0.0, %v1188
        %1190 = vdwg.mxu0
        %1192 = vrot.lane.b32.xlu0 %v1137, 8
        %v1193 = vpop.permute.xlu0 %1192
        %1196 = vrot.lane.b32.xlu0 %v1163, 16
        %v1197 = vpop.permute.xlu0 %1196
        %1200 = vrot.lane.b32.xlu0 %v1189, 24
        %v1201 = vpop.permute.xlu0 %1200
        %v1203 = vsel %vm430, %v1111, %v1193
        %v1204 = vsel %vm704, %v1203, %v1197
        %v1205 = vsel %vm706, %v1204, %v1201
        %s1206 = scalar_lea.vmem %s3, 32
        %v1207 = vld [vmem:[%s1206] sm:$0xff]
        %v1208 = vld [vmem:[%s1206 + $0x8] sm:$0xff]
        %v1209 = vld [vmem:[%s1206 + $0x10] sm:$0xff]
        %v1210 = vld [vmem:[%s1206 + $0x18] sm:$0xff]
        %v1212 = vsel %vm365, %v1205, 0
        %1214 = vmatpush.msra.mxu0 0.0
        %1215 = vmatpush.msra.mxu0 0.0
        %1216 = vmatpush.msra.mxu0 0.0
        %1217 = vmatpush.msra.mxu0 0.0
        %1218 = vmatpush.msra.mxu0 0.0
        %1219 = vmatpush.msra.mxu0 0.0
        %1220 = vmatpush.msra.mxu0 0.0
        %1221 = vmatpush.msra.mxu0 0.0
        %1222 = vmatpush.msra.mxu0 0.0
        %1223 = vmatpush.msra.mxu0 0.0
        %1224 = vmatpush.msra.mxu0 0.0
        %1225 = vmatpush.msra.mxu0 0.0
        %1226 = vmatpush.msra.mxu0 %v1210
        %1227 = vmatpush.msra.mxu0 %v1209
        %1228 = vmatpush.msra.mxu0 %v1208
        %1229 = vmatpush.msra.mxu0 %v1207
        %1230 = vmatmul.f32.gmra.mxu0 %v1212
        %v1231 = vpop.f32.mrf.mxu0
        %v1232 = vadd.f32 0.0, %v1231
        %1233 = vdwg.mxu0
        %v1234 = vadd.f32 %v870, %v1232
        %v1235 = vperm.slane %v872, 3
        %v1236 = vadd.f32 %v1234, %v1235
        %v1237 = vsel %vm365, %v1236, 0.0
        %1238 = vadd.xlane.f32.xlu0 %v1237
        %v1239 = vpop.xlane.xlu0 %1238
        %v1240 = vmul.f32 %v1239, %v375
        %v1241 = vsub.f32 %v1236, %v1240
        %v1242 = vmul.f32 %v1241, %v1241
        %v1243 = vsel %vm365, %v1242, 0.0
        %1244 = vadd.xlane.f32.xlu0 %v1243
        %v1245 = vpop.xlane.xlu0 %1244
        %v1246 = vmul.f32 %v1245, %v375
        %v1247 = vadd.f32 %v1246, 1e-05
        %v1248 = vrsqrt.pop %v1247
        %v1249 = vmul.f32 %v1248, %v1247
        %v1250 = vmul.f32 %v1249, %v1248
        %v1251 = vmul.f32 0.5, %v1250
        %v1252 = vsub.f32 1.5, %v1251
        %v1253 = vmul.f32 %v1248, %v1252
        %vm1254 = vweird.f32 %v1247
        %vm1255 = vweird.f32 %v1248
        %vm1256 = vmor %vm1254, %vm1255
        %v1257 = vsel %vm1256, %v1248, %v1253
        %v1258 = vmul.f32 %v1241, %v1257
        %v1259 = vperm.slane %v872, 4
        %v1260 = vmul.f32 %v1258, %v1259
        %v1261 = vperm.slane %v872, 5
        %v1262 = vadd.f32 %v1260, %v1261
        %s1263 = scalar_lea.vmem %s4, 32
        %v1264 = vld [vmem:[%s1263] sm:$0xff]
        %v1265 = vld [vmem:[%s1263 + $0x8] sm:$0xff]
        %v1266 = vld [vmem:[%s1263 + $0x10] sm:$0xff]
        %v1267 = vld [vmem:[%s1263 + $0x18] sm:$0xff]
        %v1268 = vperm.slane %v872, 6
        %v1270 = vsel %vm365, %v1262, 0
        %1272 = vmatpush.msra.mxu0 0.0
        %1273 = vmatpush.msra.mxu0 0.0
        %1274 = vmatpush.msra.mxu0 0.0
        %1275 = vmatpush.msra.mxu0 0.0
        %1276 = vmatpush.msra.mxu0 0.0
        %1277 = vmatpush.msra.mxu0 0.0
        %1278 = vmatpush.msra.mxu0 0.0
        %1279 = vmatpush.msra.mxu0 0.0
        %1280 = vmatpush.msra.mxu0 0.0
        %1281 = vmatpush.msra.mxu0 0.0
        %1282 = vmatpush.msra.mxu0 0.0
        %1283 = vmatpush.msra.mxu0 0.0
        %1284 = vmatpush.msra.mxu0 %v1267
        %1285 = vmatpush.msra.mxu0 %v1266
        %1286 = vmatpush.msra.mxu0 %v1265
        %1287 = vmatpush.msra.mxu0 %v1264
        %1288 = vmatmul.f32.gmra.mxu0 %v1270
        %v1289 = vpop.f32.mrf.mxu0
        %v1290 = vadd.f32 %v1268, %v1289
        %1291 = vdwg.mxu0
        %v1292 = vmul.f32 %v1290, 0.5
        %v1293 = vmul.f32 %v1290, 0.70710677
        %v1294 = vmul.f32 %v1293, %v1293
        %v1295 = vmin.f32 16.0, %v1294
        %v1296 = vmul.f32 %v1295, 2.1237322e-06
        %v1297 = vadd.f32 %v1296, 0.00028619796
        %v1298 = vmul.f32 %v1295, %v1297
        %v1299 = vadd.f32 %v1298, 0.0036580483
        %v1300 = vmul.f32 %v1295, %v1299
        %v1301 = vadd.f32 %v1300, 0.05243302
        %v1302 = vmul.f32 %v1295, %v1301
        %v1303 = vadd.f32 %v1302, 0.18741608
        %v1304 = vmul.f32 %v1295, %v1303
        %v1305 = vadd.f32 %v1304, 1.1283791
        %v1306 = vmul.f32 %v1293, %v1305
        %v1307 = vmul.f32 %v1295, 3.8918573e-05
        %v1308 = vadd.f32 %v1307, 0.001143296
        %v1309 = vmul.f32 %v1295, %v1308
        %v1310 = vadd.f32 %v1309, 0.014752088
        %v1311 = vmul.f32 %v1295, %v1310
        %v1312 = vadd.f32 %v1311, 0.112945676
        %v1313 = vmul.f32 %v1295, %v1312
        %v1314 = vadd.f32 %v1313, 0.4994258
        %v1315 = vmul.f32 %v1295, %v1314
        %v1316 = vadd.f32 %v1315, 1.0
        %v1317 = vrcp.pop %v1316
        %v1318 = vmul.f32 %v1316, %v1317
        %v1319 = vsub.f32 1.0, %v1318
        %v1320 = vmul.f32 %v1317, %v1319
        %v1321 = vadd.f32 %v1317, %v1320
        %vm1322 = vweird.f32 %v1316
        %vm1323 = vweird.f32 %v1317
        %vm1324 = vmor %vm1322, %vm1323
        %v1325 = vsel %vm1324, %v1317, %v1321
        %v1326 = vand.u32 2147483647, %v1316
        %vm1327 = vcmp.eq.f32.partialorder %v1326, 8.507059e+37
        %v1328 = vand.u32 %v1316, 2147483648
        %v1329 = vor.u32 1.1754944e-38, %v1328
        %v1330 = vsel %vm1327, %v1329, %v1325
        %v1331 = vmul.f32 %v1306, %v1330
        %v1332 = vmin.f32 %v1331, 1.0
        %v1333 = vmax.f32 %v1332, -1.0
        %v1334 = vadd.f32 %v1333, 1.0
        %v1335 = vmul.f32 %v1292, %v1334
        %s1336 = scalar_lea.vmem %s5, 64
        %v1337 = vld [vmem:[%s1336] sm:$0xff]
        %v1338 = vld [vmem:[%s1336 + $0x8] sm:$0xff]
        %v1339 = vld [vmem:[%s1336 + $0x10] sm:$0xff]
        %v1340 = vld [vmem:[%s1336 + $0x18] sm:$0xff]
        %v1341 = vld [vmem:[%s1336 + $0x20] sm:$0xff]
        %v1342 = vld [vmem:[%s1336 + $0x28] sm:$0xff]
        %v1343 = vld [vmem:[%s1336 + $0x30] sm:$0xff]
        %v1344 = vld [vmem:[%s1336 + $0x38] sm:$0xff]
        %v1346 = vsel %vm844, %v1335, 0
        %1348 = vmatpush.msra.mxu0 0.0
        %1349 = vmatpush.msra.mxu0 0.0
        %1350 = vmatpush.msra.mxu0 0.0
        %1351 = vmatpush.msra.mxu0 0.0
        %1352 = vmatpush.msra.mxu0 0.0
        %1353 = vmatpush.msra.mxu0 0.0
        %1354 = vmatpush.msra.mxu0 0.0
        %1355 = vmatpush.msra.mxu0 0.0
        %1356 = vmatpush.msra.mxu0 %v1344
        %1357 = vmatpush.msra.mxu0 %v1343
        %1358 = vmatpush.msra.mxu0 %v1342
        %1359 = vmatpush.msra.mxu0 %v1341
        %1360 = vmatpush.msra.mxu0 %v1340
        %1361 = vmatpush.msra.mxu0 %v1339
        %1362 = vmatpush.msra.mxu0 %v1338
        %1363 = vmatpush.msra.mxu0 %v1337
        %1364 = vmatmul.f32.gmra.mxu0 %v1346
        %v1365 = vpop.f32.mrf.mxu0
        %v1366 = vadd.f32 0.0, %v1365
        %1367 = vdwg.mxu0
        %v1368 = vadd.f32 %v1236, %v1366
        %v1369 = vperm.slane %v872, 7
        %v1370 = vadd.f32 %v1368, %v1369
        %v1371 = vld [vmem:[%s9] sm:$0xff]
        %v1372 = vld [vmem:[%s9 + $0x8] sm:$0xff]
        %v1373 = vld [vmem:[%s9 + $0x10] sm:$0xff]
        %vm1374 = vcmask 261127
        %v1375 = vsel %vm1374, %v1370, 0.0
        %1376 = vadd.xlane.f32.xlu0 %v1375
        %v1377 = vpop.xlane.xlu0 %1376
        %v1378 = vmul.f32 %v1377, %v375
        %v1379 = vsub.f32 %v1370, %v1378
        %v1380 = vmul.f32 %v1379, %v1379
        %v1381 = vsel %vm1374, %v1380, 0.0
        %1382 = vadd.xlane.f32.xlu0 %v1381
        %v1383 = vpop.xlane.xlu0 %1382
        %v1384 = vmul.f32 %v1383, %v375
        %v1385 = vadd.f32 %v1384, 1e-05
        %v1386 = vrsqrt.pop %v1385
        %v1387 = vmul.f32 %v1386, %v1385
        %v1388 = vmul.f32 %v1387, %v1386
        %v1389 = vmul.f32 0.5, %v1388
        %v1390 = vsub.f32 1.5, %v1389
        %v1391 = vmul.f32 %v1386, %v1390
        %vm1392 = vweird.f32 %v1385
        %vm1393 = vweird.f32 %v1386
        %vm1394 = vmor %vm1392, %vm1393
        %v1395 = vsel %vm1394, %v1386, %v1391
        %v1396 = vmul.f32 %v1379, %v1395
        %v1398 = vrot.slane %v1371, 1
        %v1400 = vmul.f32 %v1396, %v1398
        %v1401 = vrot.slane %v1371, 2
        %v1403 = vadd.f32 %v1400, %v1401
        %v1404 = vld [vmem:[%s7] sm:$0xff]
        %v1405 = vld [vmem:[%s7 + $0x8] sm:$0xff]
        %v1406 = vld [vmem:[%s7 + $0x10] sm:$0xff]
        %v1407 = vld [vmem:[%s7 + $0x18] sm:$0xff]
        %v1408 = vld [vmem:[%s7 + $0x20] sm:$0xff]
        %v1409 = vld [vmem:[%s7 + $0x28] sm:$0xff]
        %v1410 = vld [vmem:[%s7 + $0x30] sm:$0xff]
        %v1411 = vld [vmem:[%s7 + $0x38] sm:$0xff]
        %v1412 = vld [vmem:[%s7 + $0x40] sm:$0xff]
        %v1413 = vld [vmem:[%s7 + $0x48] sm:$0xff]
        %v1414 = vld [vmem:[%s7 + $0x50] sm:$0xff]
        %v1415 = vld [vmem:[%s7 + $0x58] sm:$0xff]
        %v1417 = vrot.slane %v1403, 7
        %v1420 = vrot.slane %v1372, 2
        %v1421 = vrot.slane %v1373, 2
        %v1424 = vsel %vm365, %v1417, 0
        %1426 = vmatpush.msra.mxu0 0.0
        %1427 = vmatpush.msra.mxu0 0.0
        %1428 = vmatpush.msra.mxu0 0.0
        %1429 = vmatpush.msra.mxu0 0.0
        %1430 = vmatpush.msra.mxu0 0.0
        %1431 = vmatpush.msra.mxu0 0.0
        %1432 = vmatpush.msra.mxu0 0.0
        %1433 = vmatpush.msra.mxu0 0.0
        %1434 = vmatpush.msra.mxu0 0.0
        %1435 = vmatpush.msra.mxu0 0.0
        %1436 = vmatpush.msra.mxu0 0.0
        %1437 = vmatpush.msra.mxu0 0.0
        %1438 = vmatpush.msra.mxu0 %v1413
        %1439 = vmatpush.msra.mxu0 %v1410
        %1440 = vmatpush.msra.mxu0 %v1407
        %1441 = vmatpush.msra.mxu0 %v1404
        %1442 = vmatmul.f32.gmra.mxu0 %v1424
        %v1443 = vpop.f32.mrf.mxu0
        %v1444 = vadd.f32 %v1401, %v1443
        %1445 = vdwg.mxu0
        %1446 = vmatpush.msra.mxu0 0.0
        %1447 = vmatpush.msra.mxu0 0.0
        %1448 = vmatpush.msra.mxu0 0.0
        %1449 = vmatpush.msra.mxu0 0.0
        %1450 = vmatpush.msra.mxu0 0.0
        %1451 = vmatpush.msra.mxu0 0.0
        %1452 = vmatpush.msra.mxu0 0.0
        %1453 = vmatpush.msra.mxu0 0.0
        %1454 = vmatpush.msra.mxu0 0.0
        %1455 = vmatpush.msra.mxu0 0.0
        %1456 = vmatpush.msra.mxu0 0.0
        %1457 = vmatpush.msra.mxu0 0.0
        %1458 = vmatpush.msra.mxu0 %v1414
        %1459 = vmatpush.msra.mxu0 %v1411
        %1460 = vmatpush.msra.mxu0 %v1408
        %1461 = vmatpush.msra.mxu0 %v1405
        %1462 = vmatmul.f32.gmra.mxu0 %v1424
        %v1463 = vpop.f32.mrf.mxu0
        %v1464 = vadd.f32 %v1420, %v1463
        %1465 = vdwg.mxu0
        %1466 = vmatpush.msra.mxu0 0.0
        %1467 = vmatpush.msra.mxu0 0.0
        %1468 = vmatpush.msra.mxu0 0.0
        %1469 = vmatpush.msra.mxu0 0.0
        %1470 = vmatpush.msra.mxu0 0.0
        %1471 = vmatpush.msra.mxu0 0.0
        %1472 = vmatpush.msra.mxu0 0.0
        %1473 = vmatpush.msra.mxu0 0.0
        %1474 = vmatpush.msra.mxu0 0.0
        %1475 = vmatpush.msra.mxu0 0.0
        %1476 = vmatpush.msra.mxu0 0.0
        %1477 = vmatpush.msra.mxu0 0.0
        %1478 = vmatpush.msra.mxu0 %v1415
        %1479 = vmatpush.msra.mxu0 %v1412
        %1480 = vmatpush.msra.mxu0 %v1409
        %1481 = vmatpush.msra.mxu0 %v1406
        %1482 = vmatmul.f32.gmra.mxu0 %v1424
        %v1483 = vpop.f32.mrf.mxu0
        %v1484 = vadd.f32 %v1421, %v1483
        %1485 = vdwg.mxu0
        %v1486 = vmax.f32 %v1444, 0.0
        %v1487 = vmax.f32 %v1464, 0.0
        %v1488 = vmax.f32 %v1484, 0.0
        %v1489 = vld [vmem:[%s8] sm:$0xff]
        %v1490 = vld [vmem:[%s8 + $0x8] sm:$0xff]
        %v1491 = vld [vmem:[%s8 + $0x10] sm:$0xff]
        %v1492 = vld [vmem:[%s8 + $0x18] sm:$0xff]
        %v1493 = vld [vmem:[%s8 + $0x20] sm:$0xff]
        %v1494 = vld [vmem:[%s8 + $0x28] sm:$0xff]
        %v1495 = vld [vmem:[%s8 + $0x30] sm:$0xff]
        %v1496 = vld [vmem:[%s8 + $0x38] sm:$0xff]
        %v1497 = vld [vmem:[%s8 + $0x40] sm:$0xff]
        %v1498 = vld [vmem:[%s8 + $0x48] sm:$0xff]
        %v1499 = vld [vmem:[%s8 + $0x50] sm:$0xff]
        %v1500 = vld [vmem:[%s8 + $0x58] sm:$0xff]
        %v1501 = vld [vmem:[%s8 + $0x60] sm:$0xff]
        %v1502 = vld [vmem:[%s8 + $0x68] sm:$0xff]
        %v1503 = vld [vmem:[%s8 + $0x70] sm:$0xff]
        %v1504 = vld [vmem:[%s8 + $0x78] sm:$0xff]
        %v1505 = vld [vmem:[%s8 + $0x80] sm:$0xff]
        %v1506 = vld [vmem:[%s8 + $0x88] sm:$0xff]
        %v1507 = vld [vmem:[%s8 + $0x90] sm:$0xff]
        %v1508 = vld [vmem:[%s8 + $0x98] sm:$0xff]
        %v1509 = vld [vmem:[%s8 + $0xa0] sm:$0xff]
        %v1510 = vld [vmem:[%s8 + $0xa8] sm:$0xff]
        %v1511 = vld [vmem:[%s8 + $0xb0] sm:$0xff]
        %v1512 = vld [vmem:[%s8 + $0xb8] sm:$0xff]
        %v1513 = vld [vmem:[%s8 + $0xc0] sm:$0xff]
        %v1514 = vld [vmem:[%s8 + $0xc8] sm:$0xff]
        %v1515 = vld [vmem:[%s8 + $0xd0] sm:$0xff]
        %v1516 = vld [vmem:[%s8 + $0xd8] sm:$0xff]
        %v1517 = vld [vmem:[%s8 + $0xe0] sm:$0xff]
        %v1518 = vld [vmem:[%s8 + $0xe8] sm:$0xff]
        %v1519 = vld [vmem:[%s8 + $0xf0] sm:$0xff]
        %v1520 = vld [vmem:[%s8 + $0xf8] sm:$0xff]
        %v1521 = vld [vmem:[%s8 + $0x100] sm:$0xff]
        %v1522 = vld [vmem:[%s8 + $0x108] sm:$0xff]
        %v1523 = vld [vmem:[%s8 + $0x110] sm:$0xff]
        %v1524 = vld [vmem:[%s8 + $0x118] sm:$0xff]
        %v1525 = vld [vmem:[%s8 + $0x120] sm:$0xff]
        %v1526 = vld [vmem:[%s8 + $0x128] sm:$0xff]
        %v1527 = vld [vmem:[%s8 + $0x130] sm:$0xff]
        %v1528 = vld [vmem:[%s8 + $0x138] sm:$0xff]
        %v1529 = vrot.slane %v1371, 3
        %v1532 = vsel %vm844, %v1488, 0
        %1534 = vmatpush.msra.mxu0 %v1504
        %1535 = vmatpush.msra.mxu0 %v1503
        %1536 = vmatpush.msra.mxu0 %v1502
        %1537 = vmatpush.msra.mxu0 %v1501
        %1538 = vmatpush.msra.mxu0 %v1500
        %1539 = vmatpush.msra.mxu0 %v1499
        %1540 = vmatpush.msra.mxu0 %v1498
        %1541 = vmatpush.msra.mxu0 %v1497
        %1542 = vmatpush.msra.mxu0 %v1496
        %1543 = vmatpush.msra.mxu0 %v1495
        %1544 = vmatpush.msra.mxu0 %v1494
        %1545 = vmatpush.msra.mxu0 %v1493
        %1546 = vmatpush.msra.mxu0 %v1492
        %1547 = vmatpush.msra.mxu0 %v1491
        %1548 = vmatpush.msra.mxu0 %v1490
        %1549 = vmatpush.msra.mxu0 %v1489
        %1550 = vmatmul.f32.gmra.mxu0 %v1486
        %v1551 = vpop.f32.mrf.mxu0
        %v1552 = vadd.f32 %v1529, %v1551
        %1553 = vdwg.mxu0
        %1554 = vmatpush.msra.mxu0 %v1520
        %1555 = vmatpush.msra.mxu0 %v1519
        %1556 = vmatpush.msra.mxu0 %v1518
        %1557 = vmatpush.msra.mxu0 %v1517
        %1558 = vmatpush.msra.mxu0 %v1516
        %1559 = vmatpush.msra.mxu0 %v1515
        %1560 = vmatpush.msra.mxu0 %v1514
        %1561 = vmatpush.msra.mxu0 %v1513
        %1562 = vmatpush.msra.mxu0 %v1512
        %1563 = vmatpush.msra.mxu0 %v1511
        %1564 = vmatpush.msra.mxu0 %v1510
        %1565 = vmatpush.msra.mxu0 %v1509
        %1566 = vmatpush.msra.mxu0 %v1508
        %1567 = vmatpush.msra.mxu0 %v1507
        %1568 = vmatpush.msra.mxu0 %v1506
        %1569 = vmatpush.msra.mxu0 %v1505
        %1570 = vmatmul.f32.gmra.mxu0 %v1487
        %v1571 = vpop.f32.mrf.mxu0
        %v1572 = vadd.f32 %v1552, %v1571
        %1573 = vdwg.mxu0
        %1574 = vmatpush.msra.mxu0 0.0
        %1575 = vmatpush.msra.mxu0 0.0
        %1576 = vmatpush.msra.mxu0 0.0
        %1577 = vmatpush.msra.mxu0 0.0
        %1578 = vmatpush.msra.mxu0 0.0
        %1579 = vmatpush.msra.mxu0 0.0
        %1580 = vmatpush.msra.mxu0 0.0
        %1581 = vmatpush.msra.mxu0 0.0
        %1582 = vmatpush.msra.mxu0 %v1528
        %1583 = vmatpush.msra.mxu0 %v1527
        %1584 = vmatpush.msra.mxu0 %v1526
        %1585 = vmatpush.msra.mxu0 %v1525
        %1586 = vmatpush.msra.mxu0 %v1524
        %1587 = vmatpush.msra.mxu0 %v1523
        %1588 = vmatpush.msra.mxu0 %v1522
        %1589 = vmatpush.msra.mxu0 %v1521
        %1590 = vmatmul.f32.gmra.mxu0 %v1532
        %v1591 = vpop.f32.mrf.mxu0
        %v1592 = vadd.f32 %v1572, %v1591
        %1593 = vdwg.mxu0
        %v1594 = vperm.slane %v1592, 0
        %1595 = vst.msk [vmem:[%s350] sm:$0xff] %vm365, %v1594
        %s1596 = sand.u32 %s247, 1
        %s1597 = scalar_lea.sflag [#allocation3], %s1596
        %s1598 = sand.u32 %s247, 1
        %s1599 = smul.addr %s1598, 8
        %s1600 = scalar_lea.vmem [#allocation2], %s1599
        // Predicated region
        $region61: #{tpu_custom_call.1} parent=59 // pred_check
          %p1601 = pneg %p257
        $region62: #{tpu_custom_call.1} parent=59 // pred_check_branch
          %1603 = sbr.rel (%p1601) target = $region64
        $region63: #{tpu_custom_call.1} parent=59 // pred_region
          %1605 = vsyncadd %s1597, 0
          %s1606 = smul.addr %s24, 8
          %s1607 = scalar_lea.hbm %s10, %s1606
          %s1609 = sshll.u32 %s1600, 4
          %s1610 = int_to_ptr.vmem [resolvable:$true] %s1609
          %s1611 = sshll.u32 %s1607, 4
          %s1612 = int_to_ptr.hbm [resolvable:$true] %s1611
          %1614 = dma.vmem_to_hbm [thread:$0]  %s1610, 128, %s1612, %s1597
        $region64: #{tpu_custom_call.1} parent=59 // pred_fallthru
          _
      $region60: #{tpu_custom_call.1} parent=5 // pred_fallthru
        _
      %p1615 = scmp.le.s32.totalorder 2, %s19
      // Predicated region
      $region65: #{tpu_custom_call.1} parent=5 // pred_check
        %p1616 = pneg %p1615
      $region66: #{tpu_custom_call.1} parent=5 // pred_check_branch
        %1618 = sbr.rel (%p1616) target = $region68
      $region67: #{tpu_custom_call.1} parent=5 // pred_region
        %s1619 = ssub.s32 %s19, 2
        // Predicated region
        $region69: #{tpu_custom_call.1} parent=67 // pred_check
          %p1620 = pneg %p263
        $region70: #{tpu_custom_call.1} parent=67 // pred_check_branch
          %1622 = sbr.rel (%p1620) target = $region72
        $region71: #{tpu_custom_call.1} parent=67 // pred_region
          %s1623 = sand.u32 %s248, 1
          %s1624 = scalar_lea.sflag [#allocation3], %s1623
          %s1625 = sand.u32 %s248, 1
          %s1626 = smul.addr %s1625, 8
          %s1627 = scalar_lea.vmem [#allocation2], %s1626
          %1629 = dma.done %s1624, 128
        $region72: #{tpu_custom_call.1} parent=67 // pred_fallthru
          _
      $region68: #{tpu_custom_call.1} parent=5 // pred_fallthru
        _
    $region6: #{tpu_custom_call.1} parent=1 // loop_footer
      %s23 = sadd.s32 1, %s19
    $region7: #{tpu_custom_call.1} parent=1 // loop_footer_branch
      %18 = sbr.rel target = $region3
    $region8: #{tpu_custom_call.1} parent=1 // loop_exit
      _
    %1630 = vsyncpa [#allocation3], 1
    %s1631 = scalar_lea.sflag [#allocation3], 1
    %1632 = vsyncpa %s1631, 1

</llo_original>
